<compile_context>
chip_gen: v5e
topology: v5e:2x2
jax: 0.10.0
libtpu: 0.0.40
codegen_flags: <defaults>
</compile_context>

<pallas_src>
import functools

import jax
import jax.numpy as jnp
from jax import lax
from jax.experimental import pallas as pl
from jax.experimental.pallas import tpu as pltpu

BN_EPS = 1e-5


# ----------------------------------------------------------------------------
# Fused residual-block kernel (one grid step = one batch element)
# ----------------------------------------------------------------------------
def _resblock_kernel(a1_ref, w1_ref, b1_ref, w2_ref, b2_ref, wsc_ref,
                     out_ref, s_ref, *, ho, wo, cin, conv1_folded):
    f32 = jnp.float32
    m = ho * wo
    cpad = out_ref.shape[-1]
    kc2 = 3 * cpad
    cdt = w2_ref.dtype                       # matmul compute dtype

    # ---- conv1 (+ folded BN1 scale) + bias + ReLU ---------------------------
    if conv1_folded:
        # stride == 1: W taps pre-folded into channels by the wrapper, so each
        # tap read moves only along the leading H axis of the padded block.
        kc1 = 3 * cin
        p0 = a1_ref[0, pl.ds(0, ho)].reshape(m, kc1)
        p1 = a1_ref[0, pl.ds(1, ho)].reshape(m, kc1)
        p2 = a1_ref[0, pl.ds(2, ho)].reshape(m, kc1)
        acc1 = jnp.dot(p0, w1_ref[0], preferred_element_type=f32)
        acc1 += jnp.dot(p1, w1_ref[1], preferred_element_type=f32)
        acc1 += jnp.dot(p2, w1_ref[2], preferred_element_type=f32)
        xin = p1[:, cin:2 * cin]             # centre tap == original x
    else:
        # strided conv: compact wrapper-side im2col -> single MXU matmul.
        patches = a1_ref[0]                  # (m, 9*cin)
        acc1 = jnp.dot(patches, w1_ref[...], preferred_element_type=f32)
        xin = patches[:, 4 * cin:5 * cin]    # centre tap == strided x
    out1 = jnp.maximum(acc1 + b1_ref[...], 0.0)          # (m, cpad) f32
    o1 = out1.reshape(ho, wo, cpad)

    # ---- stash W-folded out1 in a halo scratch (ho+2, wo, 3*cpad) -----------
    # Scratch layout: s[h', w, j*cpad:(j+1)*cpad] = Out1pad[h', w+j, :]
    # (Out1pad = out1 zero-padded by 1 in H and W).  Only the halo border is
    # zeroed; the interior is fully rewritten every step (megacore-safe).
    sdt = s_ref.dtype
    zrow = jnp.zeros((wo, kc2), sdt)
    s_ref[0] = zrow                                            # top halo row
    s_ref[ho + 1] = zrow                                       # bottom halo row
    # j = 1 (centre W tap): fully aligned store of out1.
    s_ref[pl.ds(1, ho), :, cpad:2 * cpad] = o1.astype(sdt)
    # j = 0 (left W tap): out1 shifted right by one column, first column zero.
    s_ref[pl.ds(1, ho), pl.ds(1, wo - 1), 0:cpad] = o1[:, 0:wo - 1, :].astype(sdt)
    s_ref[pl.ds(1, ho), pl.ds(0, 1), 0:cpad] = jnp.zeros((ho, 1, cpad), sdt)
    # j = 2 (right W tap): out1 shifted left by one column, last column zero.
    s_ref[pl.ds(1, ho), pl.ds(0, wo - 1), 2 * cpad:kc2] = o1[:, 1:wo, :].astype(sdt)
    s_ref[pl.ds(1, ho), pl.ds(wo - 1, 1), 2 * cpad:kc2] = jnp.zeros((ho, 1, cpad), sdt)

    # ---- conv2 (+ folded BN2 scale): 3 accumulating matmuls, K = 3*cpad -----
    # Per-tap reads only move along the leading H axis -> aligned, no relayout.
    acc2 = jnp.dot(s_ref[pl.ds(0, ho)].reshape(m, kc2).astype(cdt), w2_ref[0],
                   preferred_element_type=f32)
    acc2 += jnp.dot(s_ref[pl.ds(1, ho)].reshape(m, kc2).astype(cdt), w2_ref[1],
                    preferred_element_type=f32)
    acc2 += jnp.dot(s_ref[pl.ds(2, ho)].reshape(m, kc2).astype(cdt), w2_ref[2],
                    preferred_element_type=f32)

    # ---- shortcut (1x1 conv; identity expressed as eye weight) + ReLU -------
    short = jnp.dot(xin, wsc_ref[...], preferred_element_type=f32)
    out_ref[0] = jnp.maximum(acc2 + b2_ref[...] + short, 0.0).astype(out_ref.dtype)


def _fused_residual_block(a1, w1, b1, w2, b2, wsc, *, ho, wo, cin, conv1_folded):
    n = a1.shape[0]
    m = ho * wo
    cpad = b1.shape[-1]

    def rep(arr):
        nd = arr.ndim
        return pl.BlockSpec(arr.shape, lambda i, nd=nd: (0,) * nd)

    if conv1_folded:
        a1_spec = pl.BlockSpec((1,) + a1.shape[1:], lambda i: (i, 0, 0, 0))
    else:
        a1_spec = pl.BlockSpec((1,) + a1.shape[1:], lambda i: (i, 0, 0))

    in_specs = [a1_spec, rep(w1), rep(b1), rep(w2), rep(b2), rep(wsc)]
    out_spec = pl.BlockSpec((1, m, cpad), lambda i: (i, 0, 0))

    kernel = functools.partial(_resblock_kernel, ho=ho, wo=wo, cin=cin,
                               conv1_folded=conv1_folded)

    return pl.pallas_call(
        kernel,
        out_shape=jax.ShapeDtypeStruct((n, m, cpad), jnp.float32),
        grid=(n,),
        in_specs=in_specs,
        out_specs=out_spec,
        scratch_shapes=[pltpu.VMEM((ho + 2, wo, 3 * cpad), jnp.float32)],
        compiler_params=pltpu.CompilerParams(
            dimension_semantics=("parallel",),        # shard batch across TCs
            vmem_limit_bytes=48 * 1024 * 1024),       # safe on v7x (64 MiB/TC)
    )(a1, w1, b1, w2, b2, wsc)


# ----------------------------------------------------------------------------
# Wrapper glue: layout, BN folding, channel padding
# ----------------------------------------------------------------------------
def _round_up(x, mult):
    return ((x + mult - 1) // mult) * mult


def _pad_last(a, target):
    pad = target - a.shape[-1]
    if pad == 0:
        return a
    return jnp.pad(a, [(0, 0)] * (a.ndim - 1) + [(0, pad)])


def conv_weight_to_mm(w_oihw):
    """(Cout, Cin, kh, kw) -> (kh*kw*Cin, Cout) matching patch ordering."""
    cout, cin, kh, kw = w_oihw.shape
    return jnp.transpose(w_oihw, (2, 3, 1, 0)).reshape(kh * kw * cin, cout)


def fold_bn(gamma, beta, mean, var):
    scale = gamma / jnp.sqrt(var + BN_EPS)
    return scale, beta - mean * scale


def im2col_nhwc(x, kh, kw, stride, padding):
    """Compact im2col for strided convs: (N, Ho*Wo, kh*kw*C)."""
    n, h, w, c = x.shape
    xp = jnp.pad(x, ((0, 0), (padding, padding), (padding, padding), (0, 0)))
    ho = (h + 2 * padding - kh) // stride + 1
    wo = (w + 2 * padding - kw) // stride + 1
    cols = [xp[:, i:i + stride * ho:stride, j:j + stride * wo:stride, :]
            for i in range(kh) for j in range(kw)]
    patches = jnp.stack(cols, axis=-2)              # (n, ho, wo, kh*kw, c)
    return patches.reshape(n, ho * wo, kh * kw * c)


def residual_block_forward(x_nchw, params, stride, compute_dtype=jnp.bfloat16):
    n, cin, h, w = x_nchw.shape
    cout = params["w1"].shape[0]
    ho = (h + 2 - 3) // stride + 1
    wo = (w + 2 - 3) // stride + 1
    cpad = _round_up(cout, 128)
    cd = compute_dtype

    x = jnp.transpose(x_nchw, (0, 2, 3, 1))          # NHWC

    # Fold BN scales into the weights; biases survive as epilogue adds.
    s1, c1 = fold_bn(*params["bn1"])
    s2, c2 = fold_bn(*params["bn2"])

    w1_mm = _pad_last(conv_weight_to_mm(params["w1"]) * s1[None, :], cpad)  # (9*cin, cpad)
    b1 = _pad_last(c1.reshape(1, cout), cpad)

    w2_r = (conv_weight_to_mm(params["w2"]) * s2[None, :]).reshape(3, 3, cout, cout)
    w2_r = jnp.pad(w2_r, ((0, 0), (0, 0), (0, cpad - cout), (0, cpad - cout)))
    w2_f = w2_r.reshape(3, 3 * cpad, cpad)           # W taps folded into K
    b2 = c2

    if params["w_sc"] is not None:                   # projection shortcut
        ssc, csc = fold_bn(*params["bn_sc"])
        wsc = _pad_last(conv_weight_to_mm(params["w_sc"]) * ssc[None, :], cpad)
        b2 = b2 + csc                                # shortcut BN bias folded in
    else:                                            # identity as eye weight
        wsc = jnp.eye(cin, cpad, dtype=jnp.float32)
    b2 = _pad_last(b2.reshape(1, cout), cpad)

    conv1_folded = (stride == 1)
    if conv1_folded:
        # W-fold the padded input once in the wrapper: (n, ho+2, wo, 3*cin).
        xp = jnp.pad(x, ((0, 0), (1, 1), (1, 1), (0, 0)))
        a1 = jnp.concatenate(
            [xp[:, :, 0:wo, :], xp[:, :, 1:wo + 1, :], xp[:, :, 2:wo + 2, :]],
            axis=-1)
        w1 = w1_mm.reshape(3, 3 * cin, cpad)
    else:
        a1 = im2col_nhwc(x, 3, 3, stride, 1)         # (n, ho*wo, 9*cin)
        w1 = w1_mm

    out = _fused_residual_block(
        a1.astype(cd), w1.astype(cd), b1.astype(jnp.float32),
        w2_f.astype(cd), b2.astype(jnp.float32), wsc.astype(cd),
        ho=ho, wo=wo, cin=cin, conv1_folded=conv1_folded)

    out = out[:, :, :cout].reshape(n, ho, wo, cout)
    return jnp.transpose(out, (0, 3, 1, 2))          # NCHW


# ----------------------------------------------------------------------------
# Pure-JAX reference (inference-mode BN); optional cast mirrors bf16 matmuls
# ----------------------------------------------------------------------------
def ref_forward(x_nchw, params, stride, cast_dtype=None):
    dn = ("NCHW", "OIHW", "NCHW")

    def cast(a):
        return a if cast_dtype is None else a.astype(cast_dtype)

    def conv(x, w, s, pad):
        return lax.conv_general_dilated(
            cast(x), cast(w), (s, s), [(pad, pad), (pad, pad)],
            dimension_numbers=dn, preferred_element_type=jnp.float32)

    def bn(x, stats):
        scale, bias = fold_bn(*stats)
        return x * scale[None, :, None, None] + bias[None, :, None, None]

    out = jax.nn.relu(bn(conv(x_nchw, params["w1"], stride, 1), params["bn1"]))
    out = bn(conv(out, params["w2"], 1, 1), params["bn2"])
    if params["w_sc"] is not None:
        short = bn(conv(x_nchw, params["w_sc"], stride, 0), params["bn_sc"])
    else:
        short = x_nchw
    return jax.nn.relu(out + short)


# ----------------------------------------------------------------------------
# Deterministic parameter init (shapes dictated by the nn.Module __init__)
# ----------------------------------------------------------------------------
def init_params(key, in_channels, out_channels, stride):
    ks = jax.random.split(key, 12)

    def bn_stats(k0, k1, k2, k3, c):
        gamma = jax.random.uniform(k0, (c,), jnp.float32, 0.5, 1.5)
        beta = jax.random.normal(k1, (c,), jnp.float32) * 0.1
        mean = jax.random.normal(k2, (c,), jnp.float32) * 0.1
        var = jax.random.uniform(k3, (c,), jnp.float32, 0.5, 1.5)
        return (gamma, beta, mean, var)

    params = {
        "w1": jax.random.normal(ks[0], (out_channels, in_channels, 3, 3), jnp.float32) * 0.1,
        "bn1": bn_stats(ks[1], ks[2], ks[3], ks[4], out_channels),
        "w2": jax.random.normal(ks[5], (out_channels, out_channels, 3, 3), jnp.float32) * 0.1,
        "bn2": bn_stats(ks[6], ks[7], ks[8], ks[9], out_channels),
        "w_sc": None,
        "bn_sc": None,
    }
    if stride != 1 or in_channels != out_channels:
        params["w_sc"] = jax.random.normal(
            ks[10], (out_channels, in_channels, 1, 1), jnp.float32) * 0.1
        params["bn_sc"] = bn_stats(*jax.random.split(ks[11], 4), out_channels)
    return params


if __name__ == "__main__":
    key = jax.random.PRNGKey(0)

    # (in_ch, out_ch, stride, matmul compute dtype, max-abs-error tolerance)
    configs = [
        (4, 8, 2, jnp.bfloat16, 3e-2),   # projection shortcut, bf16 matmuls
        (8, 8, 1, jnp.float32, 1e-3),    # identity shortcut, f32 matmuls
    ]

    for cin, cout, stride, cdt, tol in configs:
        key, k_x, k_p = jax.random.split(key, 3)
        x = jax.random.normal(k_x, (2, cin, 16, 16), jnp.float32)   # NCHW
        params = init_params(k_p, cin, cout, stride)

        fwd = jax.jit(functools.partial(residual_block_forward,
                                        stride=stride, compute_dtype=cdt))
        out = jax.block_until_ready(fwd(x, params))

        cast = None if cdt is jnp.float32 else cdt
        ref = ref_forward(x, params, stride, cast_dtype=cast)

        ho = (16 - 1) // stride + 1
        assert out.shape == ref.shape == (2, cout, ho, ho), out.shape
        err = float(jnp.max(jnp.abs(out - ref)))
        assert err < tol, f"max err {err} (tol {tol})"

    print("KERNEL_OK")
</pallas_src>

<mosaic_0001>
module attributes {stable_mosaic.version = 11 : i64} {
  func.func @_resblock_kernel(%arg0: i32, %arg1: memref<1x64x36xbf16, #tpu.memory_space<vmem>>, %arg2: memref<36x128xbf16, #tpu.memory_space<vmem>>, %arg3: memref<1x128xf32, #tpu.memory_space<vmem>>, %arg4: memref<3x384x128xbf16, #tpu.memory_space<vmem>>, %arg5: memref<1x128xf32, #tpu.memory_space<vmem>>, %arg6: memref<4x128xbf16, #tpu.memory_space<vmem>>, %arg7: memref<1x64x128xf32, #tpu.memory_space<vmem>>, %arg8: memref<10x8x384xf32, #tpu.memory_space<vmem>>) attributes {dimension_semantics = [#tpu.dimension_semantics<parallel>], iteration_bounds = array<i64: 2>, scalar_prefetch = 0 : i64, scratch_operands = 1 : i64, tpu.core_type = #tpu.core_type<tc>, window_params = [{transform_indices = @transform_0, window_bounds = array<i64: 1, 64, 36>}, {pipeline_mode = #tpu.pipeline_mode<synchronous>, transform_indices = @transform_1, window_bounds = array<i64: 36, 128>}, {pipeline_mode = #tpu.pipeline_mode<synchronous>, transform_indices = @transform_2, window_bounds = array<i64: 1, 128>}, {pipeline_mode = #tpu.pipeline_mode<synchronous>, transform_indices = @transform_3, window_bounds = array<i64: 3, 384, 128>}, {pipeline_mode = #tpu.pipeline_mode<synchronous>, transform_indices = @transform_4, window_bounds = array<i64: 1, 128>}, {pipeline_mode = #tpu.pipeline_mode<synchronous>, transform_indices = @transform_5, window_bounds = array<i64: 4, 128>}, {transform_indices = @transform_6, window_bounds = array<i64: 1, 64, 128>}]} {
    %c0 = arith.constant 0 : index
    %c0_0 = arith.constant 0 : index
    %c0_1 = arith.constant 0 : index
    %0 = vector.load %arg1[%c0, %c0_0, %c0_1] : memref<1x64x36xbf16, #tpu.memory_space<vmem>>, vector<1x64x36xbf16>
    %1 = vector.shape_cast %0 : vector<1x64x36xbf16> to vector<64x36xbf16>
    %c0_2 = arith.constant 0 : index
    %c0_3 = arith.constant 0 : index
    %2 = vector.load %arg2[%c0_2, %c0_3] : memref<36x128xbf16, #tpu.memory_space<vmem>>, vector<36x128xbf16>
    %cst = arith.constant dense<0.000000e+00> : vector<64x128xf32>
    %3 = tpu.matmul %1, %2, %cst {dimension_numbers = #tpu.dot_dimension_numbers<[1], [0], [0], [1], [0, 0, 1, 1], [], []>} : vector<64x36xbf16>, vector<36x128xbf16>, vector<64x128xf32> -> vector<64x128xf32>
    %4 = vector.extract_strided_slice %1 {offsets = [0, 16], sizes = [64, 4], strides = [1, 1]} : vector<64x36xbf16> to vector<64x4xbf16>
    %c0_4 = arith.constant 0 : index
    %c0_5 = arith.constant 0 : index
    %5 = vector.load %arg3[%c0_4, %c0_5] : memref<1x128xf32, #tpu.memory_space<vmem>>, vector<1x128xf32>
    %6 = vector.broadcast %5 : vector<1x128xf32> to vector<64x128xf32>
    %7 = arith.addf %3, %6 : vector<64x128xf32>
    %cst_6 = arith.constant 0.000000e+00 : f32
    %8 = vector.broadcast %cst_6 : f32 to vector<64x128xf32>
    %9 = arith.maximumf %7, %8 : vector<64x128xf32>
    %10 = vector.shape_cast %9 : vector<64x128xf32> to vector<8x8x128xf32>
    %cst_7 = arith.constant 0.000000e+00 : f32
    %11 = vector.broadcast %cst_7 : f32 to vector<8x384xf32>
    %c0_8 = arith.constant 0 : index
    %c0_9 = arith.constant 0 : index
    %c0_10 = arith.constant 0 : index
    %12 = vector.load %arg8[%c0_8, %c0_9, %c0_10] : memref<10x8x384xf32, #tpu.memory_space<vmem>>, vector<1x8x384xf32>
    %13 = vector.shape_cast %12 : vector<1x8x384xf32> to vector<8x384xf32>
    %14 = vector.shape_cast %11 : vector<8x384xf32> to vector<1x8x384xf32>
    tpu.vector_store %arg8[%c0_8, %c0_9, %c0_10], %14 {strides = array<i32>} : memref<10x8x384xf32, #tpu.memory_space<vmem>>, vector<1x8x384xf32>,
    %c9 = arith.constant 9 : index
    %c0_11 = arith.constant 0 : index
    %c0_12 = arith.constant 0 : index
    %15 = vector.load %arg8[%c9, %c0_11, %c0_12] : memref<10x8x384xf32, #tpu.memory_space<vmem>>, vector<1x8x384xf32>
    %16 = vector.shape_cast %15 : vector<1x8x384xf32> to vector<8x384xf32>
    %17 = vector.shape_cast %11 : vector<8x384xf32> to vector<1x8x384xf32>
    tpu.vector_store %arg8[%c9, %c0_11, %c0_12], %17 {strides = array<i32>} : memref<10x8x384xf32, #tpu.memory_space<vmem>>, vector<1x8x384xf32>,
    %c1 = arith.constant 1 : index
    %c0_13 = arith.constant 0 : index
    %c128 = arith.constant 128 : index
    %18 = vector.load %arg8[%c1, %c0_13, %c128] : memref<10x8x384xf32, #tpu.memory_space<vmem>>, vector<8x8x128xf32>
    tpu.vector_store %arg8[%c1, %c0_13, %c128], %10 {strides = array<i32>} : memref<10x8x384xf32, #tpu.memory_space<vmem>>, vector<8x8x128xf32>,
    %19 = vector.extract_strided_slice %10 {offsets = [0, 0, 0], sizes = [8, 7, 128], strides = [1, 1, 1]} : vector<8x8x128xf32> to vector<8x7x128xf32>
    %c1_14 = arith.constant 1 : index
    %c1_15 = arith.constant 1 : index
    %c0_16 = arith.constant 0 : index
    %20 = vector.load %arg8[%c1_14, %c1_15, %c0_16] : memref<10x8x384xf32, #tpu.memory_space<vmem>>, vector<8x7x128xf32>
    tpu.vector_store %arg8[%c1_14, %c1_15, %c0_16], %19 {strides = array<i32>} : memref<10x8x384xf32, #tpu.memory_space<vmem>>, vector<8x7x128xf32>,
    %cst_17 = arith.constant 0.000000e+00 : f32
    %21 = vector.broadcast %cst_17 : f32 to vector<8x1x128xf32>
    %c1_18 = arith.constant 1 : index
    %c0_19 = arith.constant 0 : index
    %c0_20 = arith.constant 0 : index
    %22 = vector.load %arg8[%c1_18, %c0_19, %c0_20] : memref<10x8x384xf32, #tpu.memory_space<vmem>>, vector<8x1x128xf32>
    tpu.vector_store %arg8[%c1_18, %c0_19, %c0_20], %21 {strides = array<i32>} : memref<10x8x384xf32, #tpu.memory_space<vmem>>, vector<8x1x128xf32>,
    %23 = vector.extract_strided_slice %10 {offsets = [0, 1, 0], sizes = [8, 7, 128], strides = [1, 1, 1]} : vector<8x8x128xf32> to vector<8x7x128xf32>
    %c1_21 = arith.constant 1 : index
    %c0_22 = arith.constant 0 : index
    %c256 = arith.constant 256 : index
    %24 = vector.load %arg8[%c1_21, %c0_22, %c256] : memref<10x8x384xf32, #tpu.memory_space<vmem>>, vector<8x7x128xf32>
    tpu.vector_store %arg8[%c1_21, %c0_22, %c256], %23 {strides = array<i32>} : memref<10x8x384xf32, #tpu.memory_space<vmem>>, vector<8x7x128xf32>,
    %cst_23 = arith.constant 0.000000e+00 : f32
    %25 = vector.broadcast %cst_23 : f32 to vector<8x1x128xf32>
    %c1_24 = arith.constant 1 : index
    %c7 = arith.constant 7 : index
    %c256_25 = arith.constant 256 : index
    %26 = vector.load %arg8[%c1_24, %c7, %c256_25] : memref<10x8x384xf32, #tpu.memory_space<vmem>>, vector<8x1x128xf32>
    tpu.vector_store %arg8[%c1_24, %c7, %c256_25], %25 {strides = array<i32>} : memref<10x8x384xf32, #tpu.memory_space<vmem>>, vector<8x1x128xf32>,
    %c0_26 = arith.constant 0 : index
    %c0_27 = arith.constant 0 : index
    %c0_28 = arith.constant 0 : index
    %27 = vector.load %arg8[%c0_26, %c0_27, %c0_28] : memref<10x8x384xf32, #tpu.memory_space<vmem>>, vector<8x8x384xf32>
    %28 = vector.shape_cast %27 : vector<8x8x384xf32> to vector<64x384xf32>
    %29 = arith.truncf %28 : vector<64x384xf32> to vector<64x384xbf16>
    %c0_29 = arith.constant 0 : index
    %c0_30 = arith.constant 0 : index
    %c0_31 = arith.constant 0 : index
    %30 = vector.load %arg4[%c0_29, %c0_30, %c0_31] : memref<3x384x128xbf16, #tpu.memory_space<vmem>>, vector<1x384x128xbf16>
    %31 = vector.shape_cast %30 : vector<1x384x128xbf16> to vector<384x128xbf16>
    %cst_32 = arith.constant dense<0.000000e+00> : vector<64x128xf32>
    %32 = tpu.matmul %29, %31, %cst_32 {dimension_numbers = #tpu.dot_dimension_numbers<[1], [0], [0], [1], [0, 0, 1, 1], [], []>} : vector<64x384xbf16>, vector<384x128xbf16>, vector<64x128xf32> -> vector<64x128xf32>
    %c1_33 = arith.constant 1 : index
    %c0_34 = arith.constant 0 : index
    %c0_35 = arith.constant 0 : index
    %33 = vector.load %arg8[%c1_33, %c0_34, %c0_35] : memref<10x8x384xf32, #tpu.memory_space<vmem>>, vector<8x8x384xf32>
    %34 = vector.shape_cast %33 : vector<8x8x384xf32> to vector<64x384xf32>
    %35 = arith.truncf %34 : vector<64x384xf32> to vector<64x384xbf16>
    %c1_36 = arith.constant 1 : index
    %c0_37 = arith.constant 0 : index
    %c0_38 = arith.constant 0 : index
    %36 = vector.load %arg4[%c1_36, %c0_37, %c0_38] : memref<3x384x128xbf16, #tpu.memory_space<vmem>>, vector<1x384x128xbf16>
    %37 = vector.shape_cast %36 : vector<1x384x128xbf16> to vector<384x128xbf16>
    %cst_39 = arith.constant dense<0.000000e+00> : vector<64x128xf32>
    %38 = tpu.matmul %35, %37, %cst_39 {dimension_numbers = #tpu.dot_dimension_numbers<[1], [0], [0], [1], [0, 0, 1, 1], [], []>} : vector<64x384xbf16>, vector<384x128xbf16>, vector<64x128xf32> -> vector<64x128xf32>
    %39 = arith.addf %32, %38 : vector<64x128xf32>
    %c2 = arith.constant 2 : index
    %c0_40 = arith.constant 0 : index
    %c0_41 = arith.constant 0 : index
    %40 = vector.load %arg8[%c2, %c0_40, %c0_41] : memref<10x8x384xf32, #tpu.memory_space<vmem>>, vector<8x8x384xf32>
    %41 = vector.shape_cast %40 : vector<8x8x384xf32> to vector<64x384xf32>
    %42 = arith.truncf %41 : vector<64x384xf32> to vector<64x384xbf16>
    %c2_42 = arith.constant 2 : index
    %c0_43 = arith.constant 0 : index
    %c0_44 = arith.constant 0 : index
    %43 = vector.load %arg4[%c2_42, %c0_43, %c0_44] : memref<3x384x128xbf16, #tpu.memory_space<vmem>>, vector<1x384x128xbf16>
    %44 = vector.shape_cast %43 : vector<1x384x128xbf16> to vector<384x128xbf16>
    %cst_45 = arith.constant dense<0.000000e+00> : vector<64x128xf32>
    %45 = tpu.matmul %42, %44, %cst_45 {dimension_numbers = #tpu.dot_dimension_numbers<[1], [0], [0], [1], [0, 0, 1, 1], [], []>} : vector<64x384xbf16>, vector<384x128xbf16>, vector<64x128xf32> -> vector<64x128xf32>
    %46 = arith.addf %39, %45 : vector<64x128xf32>
    %c0_46 = arith.constant 0 : index
    %c0_47 = arith.constant 0 : index
    %47 = vector.load %arg6[%c0_46, %c0_47] : memref<4x128xbf16, #tpu.memory_space<vmem>>, vector<4x128xbf16>
    %cst_48 = arith.constant dense<0.000000e+00> : vector<64x128xf32>
    %48 = tpu.matmul %4, %47, %cst_48 {dimension_numbers = #tpu.dot_dimension_numbers<[1], [0], [0], [1], [0, 0, 1, 1], [], []>} : vector<64x4xbf16>, vector<4x128xbf16>, vector<64x128xf32> -> vector<64x128xf32>
    %c0_49 = arith.constant 0 : index
    %c0_50 = arith.constant 0 : index
    %49 = vector.load %arg5[%c0_49, %c0_50] : memref<1x128xf32, #tpu.memory_space<vmem>>, vector<1x128xf32>
    %50 = vector.broadcast %49 : vector<1x128xf32> to vector<64x128xf32>
    %51 = arith.addf %46, %50 : vector<64x128xf32>
    %52 = arith.addf %51, %48 : vector<64x128xf32>
    %cst_51 = arith.constant 0.000000e+00 : f32
    %53 = vector.broadcast %cst_51 : f32 to vector<64x128xf32>
    %54 = arith.maximumf %52, %53 : vector<64x128xf32>
    %c0_52 = arith.constant 0 : index
    %c0_53 = arith.constant 0 : index
    %c0_54 = arith.constant 0 : index
    %55 = vector.load %arg7[%c0_52, %c0_53, %c0_54] : memref<1x64x128xf32, #tpu.memory_space<vmem>>, vector<1x64x128xf32>
    %56 = vector.shape_cast %55 : vector<1x64x128xf32> to vector<64x128xf32>
    %57 = vector.shape_cast %54 : vector<64x128xf32> to vector<1x64x128xf32>
    tpu.vector_store %arg7[%c0_52, %c0_53, %c0_54], %57 {strides = array<i32>} : memref<1x64x128xf32, #tpu.memory_space<vmem>>, vector<1x64x128xf32>,
    return
  }
  func.func @transform_0(%arg0: i32) -> (i32, i32, i32) {
    %c0_i32 = arith.constant 0 : i32
    %c0_i32_0 = arith.constant 0 : i32
    %c0_i32_1 = arith.constant 0 : i32
    return %arg0, %c0_i32, %c0_i32_0 : i32, i32, i32
  }
  func.func @transform_1(%arg0: i32) -> (i32, i32) {
    %c0_i32 = arith.constant 0 : i32
    %c0_i32_0 = arith.constant 0 : i32
    %c0_i32_1 = arith.constant 0 : i32
    return %c0_i32, %c0_i32_0 : i32, i32
  }
  func.func @transform_2(%arg0: i32) -> (i32, i32) {
    %c0_i32 = arith.constant 0 : i32
    %c0_i32_0 = arith.constant 0 : i32
    %c0_i32_1 = arith.constant 0 : i32
    return %c0_i32, %c0_i32_0 : i32, i32
  }
  func.func @transform_3(%arg0: i32) -> (i32, i32, i32) {
    %c0_i32 = arith.constant 0 : i32
    %c0_i32_0 = arith.constant 0 : i32
    %c0_i32_1 = arith.constant 0 : i32
    %c0_i32_2 = arith.constant 0 : i32
    return %c0_i32, %c0_i32_0, %c0_i32_1 : i32, i32, i32
  }
  func.func @transform_4(%arg0: i32) -> (i32, i32) {
    %c0_i32 = arith.constant 0 : i32
    %c0_i32_0 = arith.constant 0 : i32
    %c0_i32_1 = arith.constant 0 : i32
    return %c0_i32, %c0_i32_0 : i32, i32
  }
  func.func @transform_5(%arg0: i32) -> (i32, i32) {
    %c0_i32 = arith.constant 0 : i32
    %c0_i32_0 = arith.constant 0 : i32
    %c0_i32_1 = arith.constant 0 : i32
    return %c0_i32, %c0_i32_0 : i32, i32
  }
  func.func @transform_6(%arg0: i32) -> (i32, i32, i32) {
    %c0_i32 = arith.constant 0 : i32
    %c0_i32_0 = arith.constant 0 : i32
    %c0_i32_1 = arith.constant 0 : i32
    return %arg0, %c0_i32, %c0_i32_0 : i32, i32, i32
  }
}

</mosaic_0001>

<llo_original>
// kernel: residual_block_forward.1
$region0: #{residual_block_forward.1}
  #allocation0 [shape = 'u32[]', space=smem, size = 0x4, offset = 0x4, fixed_abs, tag = 'smem constant byte address 0x4 - core index']
  #allocation1 [shape = 'u32[72,128]{1,0:T(1,128)}', space=vmem, size = 0x9000, scoped, tag = 'internal scratch']
  #allocation2 [shape = 'f32[10,8,384]{2,1,0:T(8,128)}', space=vmem, size = 0x1e000, scoped, tag = 'scratch operand']
  %s0 = inlined_call_operand.vmem [shape: bf16[2,64,36], index: 0, kind: input, shape index: {}]
  %s1 = inlined_call_operand.vmem [shape: bf16[36,128], index: 1, kind: input, shape index: {}]
  %s2 = inlined_call_operand.vmem [shape: f32[1,128], index: 2, kind: input, shape index: {}]
  %s3 = inlined_call_operand.vmem [shape: bf16[3,384,128], index: 3, kind: input, shape index: {}]
  %s4 = inlined_call_operand.vmem [shape: f32[1,128], index: 4, kind: input, shape index: {}]
  %s5 = inlined_call_operand.vmem [shape: bf16[4,128], index: 5, kind: input, shape index: {}]
  %s6 = inlined_call_operand.vmem [shape: f32[2,64,128], index: 6, kind: output, shape index: {}]
  %s7 = sld [smem:[#allocation0]]
  $region57: #{residual_block_forward.1} parent=0
    _
  %s9 = ssub.s32 1, %s7
  %s10 = scalar_select 0, %s9, %s7
  loop: start=0, step=1, limit=4
  $region2: #{residual_block_forward.1} parent=0 // loop_pre_header
    _
  $region3: #{residual_block_forward.1} parent=0 // loop_header
    %s12 = sphi 0, %s16
    %p13 = scmp.ge.s32.totalorder %s12, 4
    %s22 = sphi 0, %s24
    %s25 = sphi 0, %s22
    %s26 = sphi 0, %s25
    %s42 = sphi 0, %s26
    %s46 = sphi 0, %s46
    %s48 = sphi 0, %s46
    %s49 = sphi 0, %s48
    %s63 = sphi 0, %s49
    %s67 = sphi 0, %s67
    %s69 = sphi 0, %s67
    %s70 = sphi 0, %s69
    %s84 = sphi 0, %s70
    %s88 = sphi 0, %s88
    %s90 = sphi 0, %s88
    %s91 = sphi 0, %s90
    %s105 = sphi 0, %s91
    %s109 = sphi 0, %s109
    %s111 = sphi 0, %s109
    %s112 = sphi 0, %s111
    %s126 = sphi 0, %s112
    %s130 = sphi 0, %s130
    %s132 = sphi 0, %s130
    %s133 = sphi 0, %s132
    %s147 = sphi 0, %s133
    %s153 = sphi 0, %s155
    %s156 = sphi 0, %s153
    %s157 = sphi 0, %s156
    %s173 = sphi 0, %s157
  $region4: #{residual_block_forward.1} parent=0 // loop_header_branch
    %15 = sbr.rel (%p13) target = $region8
  $region5: #{residual_block_forward.1} parent=0 // loop_body
    %s17 = ssub.s32 %s12, 1
    %s18 = ssub.s32 %s12, 2
    %s19 = sadd.s32 %s12, 1
    %s20 = ssub.s32 %s12, %s19
    %p21 = scmp.eq.s32.totalorder %s20, 0
    %s23 = sadd.s32 %s22, 1
    %s24 = scalar_select %p21, %s22, %s23
    %p27 = pneg %p21
    %p28 = scmp.eq.s32.totalorder %s12, 1
    %p29 = por %p27, %p28
    %p30 = scmp.ne.s32.totalorder %s22, %s25
    %p31 = scmp.eq.s32.totalorder %s12, 0
    %p32 = por %p30, %p31
    %p33 = scmp.ne.s32.totalorder %s22, %s25
    %p34 = scmp.eq.s32.totalorder %s17, 1
    %p35 = por %p33, %p34
    %p36 = scmp.ne.s32.totalorder %s25, %s26
    %p37 = scmp.eq.s32.totalorder %s17, 0
    %p38 = por %p36, %p37
    %p39 = scmp.ne.s32.totalorder %s25, %s26
    %p40 = scmp.eq.s32.totalorder %s18, 1
    %p41 = por %p39, %p40
    %p43 = scmp.ne.s32.totalorder %s26, %s42
    %p44 = scmp.eq.s32.totalorder %s18, 0
    %p45 = por %p43, %p44
    %s47 = sadd.s32 %s46, 1
    %p50 = scmp.eq.s32.totalorder %s12, 1
    %p51 = scmp.ne.s32.totalorder %s46, %s48
    %p52 = scmp.eq.s32.totalorder %s12, 0
    %p53 = por %p51, %p52
    %p54 = scmp.ne.s32.totalorder %s46, %s48
    %p55 = scmp.eq.s32.totalorder %s17, 1
    %p56 = por %p54, %p55
    %p57 = scmp.ne.s32.totalorder %s48, %s49
    %p58 = scmp.eq.s32.totalorder %s17, 0
    %p59 = por %p57, %p58
    %p60 = scmp.ne.s32.totalorder %s48, %s49
    %p61 = scmp.eq.s32.totalorder %s18, 1
    %p62 = por %p60, %p61
    %p64 = scmp.ne.s32.totalorder %s49, %s63
    %p65 = scmp.eq.s32.totalorder %s18, 0
    %p66 = por %p64, %p65
    %s68 = sadd.s32 %s67, 1
    %p71 = scmp.eq.s32.totalorder %s12, 1
    %p72 = scmp.ne.s32.totalorder %s67, %s69
    %p73 = scmp.eq.s32.totalorder %s12, 0
    %p74 = por %p72, %p73
    %p75 = scmp.ne.s32.totalorder %s67, %s69
    %p76 = scmp.eq.s32.totalorder %s17, 1
    %p77 = por %p75, %p76
    %p78 = scmp.ne.s32.totalorder %s69, %s70
    %p79 = scmp.eq.s32.totalorder %s17, 0
    %p80 = por %p78, %p79
    %p81 = scmp.ne.s32.totalorder %s69, %s70
    %p82 = scmp.eq.s32.totalorder %s18, 1
    %p83 = por %p81, %p82
    %p85 = scmp.ne.s32.totalorder %s70, %s84
    %p86 = scmp.eq.s32.totalorder %s18, 0
    %p87 = por %p85, %p86
    %s89 = sadd.s32 %s88, 1
    %p92 = scmp.eq.s32.totalorder %s12, 1
    %p93 = scmp.ne.s32.totalorder %s88, %s90
    %p94 = scmp.eq.s32.totalorder %s12, 0
    %p95 = por %p93, %p94
    %p96 = scmp.ne.s32.totalorder %s88, %s90
    %p97 = scmp.eq.s32.totalorder %s17, 1
    %p98 = por %p96, %p97
    %p99 = scmp.ne.s32.totalorder %s90, %s91
    %p100 = scmp.eq.s32.totalorder %s17, 0
    %p101 = por %p99, %p100
    %p102 = scmp.ne.s32.totalorder %s90, %s91
    %p103 = scmp.eq.s32.totalorder %s18, 1
    %p104 = por %p102, %p103
    %p106 = scmp.ne.s32.totalorder %s91, %s105
    %p107 = scmp.eq.s32.totalorder %s18, 0
    %p108 = por %p106, %p107
    %s110 = sadd.s32 %s109, 1
    %p113 = scmp.eq.s32.totalorder %s12, 1
    %p114 = scmp.ne.s32.totalorder %s109, %s111
    %p115 = scmp.eq.s32.totalorder %s12, 0
    %p116 = por %p114, %p115
    %p117 = scmp.ne.s32.totalorder %s109, %s111
    %p118 = scmp.eq.s32.totalorder %s17, 1
    %p119 = por %p117, %p118
    %p120 = scmp.ne.s32.totalorder %s111, %s112
    %p121 = scmp.eq.s32.totalorder %s17, 0
    %p122 = por %p120, %p121
    %p123 = scmp.ne.s32.totalorder %s111, %s112
    %p124 = scmp.eq.s32.totalorder %s18, 1
    %p125 = por %p123, %p124
    %p127 = scmp.ne.s32.totalorder %s112, %s126
    %p128 = scmp.eq.s32.totalorder %s18, 0
    %p129 = por %p127, %p128
    %s131 = sadd.s32 %s130, 1
    %p134 = scmp.eq.s32.totalorder %s12, 1
    %p135 = scmp.ne.s32.totalorder %s130, %s132
    %p136 = scmp.eq.s32.totalorder %s12, 0
    %p137 = por %p135, %p136
    %p138 = scmp.ne.s32.totalorder %s130, %s132
    %p139 = scmp.eq.s32.totalorder %s17, 1
    %p140 = por %p138, %p139
    %p141 = scmp.ne.s32.totalorder %s132, %s133
    %p142 = scmp.eq.s32.totalorder %s17, 0
    %p143 = por %p141, %p142
    %p144 = scmp.ne.s32.totalorder %s132, %s133
    %p145 = scmp.eq.s32.totalorder %s18, 1
    %p146 = por %p144, %p145
    %p148 = scmp.ne.s32.totalorder %s133, %s147
    %p149 = scmp.eq.s32.totalorder %s18, 0
    %p150 = por %p148, %p149
    %s151 = ssub.s32 %s12, %s19
    %p152 = scmp.eq.s32.totalorder %s151, 0
    %s154 = sadd.s32 %s153, 1
    %s155 = scalar_select %p152, %s153, %s154
    %p158 = pneg %p152
    %p159 = scmp.eq.s32.totalorder %s12, 1
    %p160 = por %p158, %p159
    %p161 = scmp.ne.s32.totalorder %s153, %s156
    %p162 = scmp.eq.s32.totalorder %s12, 0
    %p163 = por %p161, %p162
    %p164 = scmp.ne.s32.totalorder %s153, %s156
    %p165 = scmp.eq.s32.totalorder %s17, 1
    %p166 = por %p164, %p165
    %p167 = scmp.ne.s32.totalorder %s156, %s157
    %p168 = scmp.eq.s32.totalorder %s17, 0
    %p169 = por %p167, %p168
    %p170 = scmp.ne.s32.totalorder %s156, %s157
    %p171 = scmp.eq.s32.totalorder %s18, 1
    %p172 = por %p170, %p171
    %p174 = scmp.ne.s32.totalorder %s157, %s173
    %p175 = scmp.eq.s32.totalorder %s18, 0
    %p176 = por %p174, %p175
    %p177 = scmp.le.s32.totalorder 1, %s12
    %p178 = scmp.lt.s32.totalorder %s12, 3
    %p179 = pnand %p177, %p178
    %p180 = pneg %p179
    // Predicated region
    $region9: #{residual_block_forward.1} parent=5 // pred_check
      _
    $region10: #{residual_block_forward.1} parent=5 // pred_check_branch
      %182 = sbr.rel (%p179) target = $region12
    $region11: #{residual_block_forward.1} parent=5 // pred_region
      %s183 = ssub.s32 %s12, 1
      // Predicated region
      $region13: #{residual_block_forward.1} parent=11 // pred_check
        %p184 = pneg %p59
      $region14: #{residual_block_forward.1} parent=11 // pred_check_branch
        %186 = sbr.rel (%p184) target = $region16
      $region15: #{residual_block_forward.1} parent=11 // pred_region
        _
      $region16: #{residual_block_forward.1} parent=11 // pred_fallthru
        _
      // Predicated region
      $region17: #{residual_block_forward.1} parent=11 // pred_check
        %p187 = pneg %p80
      $region18: #{residual_block_forward.1} parent=11 // pred_check_branch
        %189 = sbr.rel (%p187) target = $region20
      $region19: #{residual_block_forward.1} parent=11 // pred_region
        _
      $region20: #{residual_block_forward.1} parent=11 // pred_fallthru
        _
      // Predicated region
      $region21: #{residual_block_forward.1} parent=11 // pred_check
        %p190 = pneg %p101
      $region22: #{residual_block_forward.1} parent=11 // pred_check_branch
        %192 = sbr.rel (%p190) target = $region24
      $region23: #{residual_block_forward.1} parent=11 // pred_region
        _
      $region24: #{residual_block_forward.1} parent=11 // pred_fallthru
        _
      // Predicated region
      $region25: #{residual_block_forward.1} parent=11 // pred_check
        %p193 = pneg %p122
      $region26: #{residual_block_forward.1} parent=11 // pred_check_branch
        %195 = sbr.rel (%p193) target = $region28
      $region27: #{residual_block_forward.1} parent=11 // pred_region
        _
      $region28: #{residual_block_forward.1} parent=11 // pred_fallthru
        _
      // Predicated region
      $region29: #{residual_block_forward.1} parent=11 // pred_check
        %p196 = pneg %p143
      $region30: #{residual_block_forward.1} parent=11 // pred_check_branch
        %198 = sbr.rel (%p196) target = $region32
      $region31: #{residual_block_forward.1} parent=11 // pred_region
        _
      $region32: #{residual_block_forward.1} parent=11 // pred_fallthru
        _
    $region12: #{residual_block_forward.1} parent=5 // pred_fallthru
      _
    %p199 = scmp.lt.s32.totalorder %s12, 2
    // Predicated region
    $region33: #{residual_block_forward.1} parent=5 // pred_check
      %p200 = pneg %p199
    $region34: #{residual_block_forward.1} parent=5 // pred_check_branch
      %202 = sbr.rel (%p200) target = $region36
    $region35: #{residual_block_forward.1} parent=5 // pred_region
      // Predicated region
      $region37: #{residual_block_forward.1} parent=35 // pred_check
        %p203 = pneg %p32
      $region38: #{residual_block_forward.1} parent=35 // pred_check_branch
        %205 = sbr.rel (%p203) target = $region40
      $region39: #{residual_block_forward.1} parent=35 // pred_region
        %p206 = scmp.lt.s32.totalorder %s12, 1
        %s207 = scalar_select %p206, %s12, 1
        %s208 = smul.addr %s207, 8
        %s209 = smul.addr %s208, 4
        %s210 = scalar_lea.vmem %s0, %s209
      $region40: #{residual_block_forward.1} parent=35 // pred_fallthru
        _
    $region36: #{residual_block_forward.1} parent=5 // pred_fallthru
      _
    %p211 = scmp.le.s32.totalorder 1, %s12
    %p212 = scmp.lt.s32.totalorder %s12, 3
    %p213 = pnand %p211, %p212
    %p214 = pneg %p213
    // Predicated region
    $region41: #{residual_block_forward.1} parent=5 // pred_check
      _
    $region42: #{residual_block_forward.1} parent=5 // pred_check_branch
      %216 = sbr.rel (%p213) target = $region44
    $region43: #{residual_block_forward.1} parent=5 // pred_region
      %s217 = ssub.s32 %s12, 1
      %p218 = scmp.lt.s32.totalorder %s17, 1
      %s219 = scalar_select %p218, %s17, 1
      %s220 = smul.addr %s219, 8
      %s221 = smul.addr %s220, 4
      %s222 = scalar_lea.vmem %s0, %s221
      %p223 = pneg %p38
      %p224 = pneg %p35
      %p225 = pneg %p59
      %p226 = pneg %p56
      %p227 = pneg %p80
      %p228 = pneg %p77
      %p229 = pneg %p101
      %p230 = pneg %p98
      %p231 = pneg %p122
      %p232 = pneg %p119
      %p233 = pneg %p143
      %p234 = pneg %p140
      %p235 = pneg %p169
      %p236 = pneg %p166
      %p237 = scmp.lt.s32.totalorder %s17, 1
      %s238 = scalar_select %p237, %s17, 1
      %s239 = smul.addr %s238, 8
      %s240 = smul.addr %s239, 8
      %s241 = scalar_lea.vmem %s6, %s240
      %p242 = scmp.lt.s32.totalorder %s17, 1
      %s243 = scalar_select %p242, %s17, 1
      %s244 = smul.addr %s243, 8
      %s245 = smul.addr %s244, 4
      %s246 = scalar_lea.vmem %s0, %s245
      %p247 = scmp.lt.s32.totalorder %s17, 1
      %s248 = scalar_select %p247, %s17, 1
      %s249 = smul.addr %s248, 8
      %s250 = smul.addr %s249, 8
      %s251 = scalar_lea.vmem %s6, %s250
      %v253 = vld [vmem:[%s246] sm:$0xf]
      %v254 = vld [vmem:[%s246 + $0x4] sm:$0xf]
      %v255 = vld [vmem:[%s246 + $0x8] sm:$0xf]
      %v256 = vld [vmem:[%s246 + $0xc] sm:$0xf]
      %v257 = vld [vmem:[%s246 + $0x10] sm:$0xf]
      %v258 = vld [vmem:[%s246 + $0x14] sm:$0xf]
      %v259 = vld [vmem:[%s246 + $0x18] sm:$0xf]
      %v260 = vld [vmem:[%s246 + $0x1c] sm:$0xf]
      %v261 = vld [vmem:[%s1] sm:$0xf]
      %v262 = vld [vmem:[%s1 + $0x4] sm:$0xf]
      %v263 = vld [vmem:[%s1 + $0x8] sm:$0xf]
      %v264 = vld [vmem:[%s1 + $0xc] sm:$0xf]
      %v265 = vld [vmem:[%s1 + $0x10] sm:$0x3]
      %v266 = vld [vmem:[%s2] sm:$0x1]
      %v268 = vperm.slane %v266, 0
      %v278 = vunpack.c.l.b16 %v253
      %v279 = vunpack.c.l.b16 %v254
      %v280 = vunpack.c.l.b16 %v255
      %v281 = vunpack.c.l.b16 %v256
      %v282 = vunpack.c.l.b16 %v257
      %v283 = vunpack.c.l.b16 %v258
      %v284 = vunpack.c.l.b16 %v259
      %v285 = vunpack.c.l.b16 %v260
      %v286 = vpack.c.b16 %v279, %v278
      %v287 = vpack.c.b16 %v281, %v280
      %v288 = vpack.c.b16 %v283, %v282
      %v289 = vpack.c.b16 %v285, %v284
      %v295 = vunpack.c.l.b16 %v261
      %v296 = vunpack.c.l.b16 %v262
      %v297 = vunpack.c.l.b16 %v263
      %v298 = vunpack.c.l.b16 %v264
      %v299 = vunpack.c.l.b16 %v265
      %v300 = vpack.c.b16 %v296, %v295
      %v301 = vpack.c.b16 %v298, %v297
      %v302 = vpack.c.b16 %v299, %v299
      %vm305 = vcmask 293888
      %v307 = vsel %vm305, %v286, 0
      %v310 = vsel %vm305, %v287, 0
      %v313 = vsel %vm305, %v288, 0
      %v316 = vsel %vm305, %v289, 0
      %vm318 = vcmask 1041408
      %v320 = vsel %vm318, %v302, 0
      %322 = vmatpush.bf16.msra.mxu0 0
      %323 = vmatpush.bf16.msra.mxu0 0
      %324 = vmatpush.bf16.msra.mxu0 0
      %325 = vmatpush.bf16.msra.mxu0 0
      %326 = vmatpush.bf16.msra.mxu0 0
      %327 = vmatpush.bf16.msra.mxu0 %v320
      %328 = vmatpush.bf16.msra.mxu0 %v301
      %329 = vmatpush.bf16.msra.mxu0 %v300
      %330 = vmatmul.bf16.gmra.mxu0 %v307
      %v331 = vpop.f32.mrf.mxu0
      %v332 = vadd.f32 %v268, %v331
      %v333 = vpop.f32.mrf.mxu0
      %v334 = vadd.f32 %v268, %v333
      %335 = vmatmul.bf16.gmra.mxu0 %v310
      %v336 = vpop.f32.mrf.mxu0
      %v337 = vadd.f32 %v268, %v336
      %v338 = vpop.f32.mrf.mxu0
      %v339 = vadd.f32 %v268, %v338
      %340 = vmatmul.bf16.gmra.mxu0 %v313
      %v341 = vpop.f32.mrf.mxu0
      %v342 = vadd.f32 %v268, %v341
      %v343 = vpop.f32.mrf.mxu0
      %v344 = vadd.f32 %v268, %v343
      %345 = vmatmul.bf16.gmra.mxu0 %v316
      %v346 = vpop.f32.mrf.mxu0
      %v347 = vadd.f32 %v268, %v346
      %v348 = vpop.f32.mrf.mxu0
      %v349 = vadd.f32 %v268, %v348
      %350 = vdwg.mxu0
      %v351 = vmax.f32 %v332, 0.0
      %v352 = vmax.f32 %v334, 0.0
      %v353 = vmax.f32 %v337, 0.0
      %v354 = vmax.f32 %v339, 0.0
      %v355 = vmax.f32 %v342, 0.0
      %v356 = vmax.f32 %v344, 0.0
      %v357 = vmax.f32 %v347, 0.0
      %v358 = vmax.f32 %v349, 0.0
      %359 = vst [vmem:[#allocation2] sm:$0xff] 0.0
      %360 = vst [vmem:[#allocation2 + $0x8] sm:$0xff] 0.0
      %361 = vst [vmem:[#allocation2 + $0x10] sm:$0xff] 0.0
      %s362 = scalar_lea.vmem [#allocation2], 216
      %363 = vst [vmem:[%s362] sm:$0xff] 0.0
      %364 = vst [vmem:[%s362 + $0x8] sm:$0xff] 0.0
      %365 = vst [vmem:[%s362 + $0x10] sm:$0xff] 0.0
      %s366 = scalar_lea.vmem [#allocation2], 24
      %367 = vst [vmem:[%s366 + $0x8] sm:$0xff] %v351
      %368 = vst [vmem:[%s366 + $0x20] sm:$0xff] %v352
      %369 = vst [vmem:[%s366 + $0x38] sm:$0xff] %v353
      %370 = vst [vmem:[%s366 + $0x50] sm:$0xff] %v354
      %371 = vst [vmem:[%s366 + $0x68] sm:$0xff] %v355
      %372 = vst [vmem:[%s366 + $0x80] sm:$0xff] %v356
      %373 = vst [vmem:[%s366 + $0x98] sm:$0xff] %v357
      %374 = vst [vmem:[%s366 + $0xb0] sm:$0xff] %v358
      %v383 = vrot.slane %v351, 7
      %v384 = vrot.slane %v352, 7
      %v385 = vrot.slane %v353, 7
      %v386 = vrot.slane %v354, 7
      %v387 = vrot.slane %v355, 7
      %v388 = vrot.slane %v356, 7
      %v389 = vrot.slane %v357, 7
      %v390 = vrot.slane %v358, 7
      %399 = vst [vmem:[%s366] sm:$0xfe] %v383
      %400 = vst [vmem:[%s366 + $0x18] sm:$0xfe] %v384
      %401 = vst [vmem:[%s366 + $0x30] sm:$0xfe] %v385
      %402 = vst [vmem:[%s366 + $0x48] sm:$0xfe] %v386
      %403 = vst [vmem:[%s366 + $0x60] sm:$0xfe] %v387
      %404 = vst [vmem:[%s366 + $0x78] sm:$0xfe] %v388
      %405 = vst [vmem:[%s366 + $0x90] sm:$0xfe] %v389
      %406 = vst [vmem:[%s366 + $0xa8] sm:$0xfe] %v390
      %407 = vst [vmem:[%s366] sm:$0x1] 0.0
      %408 = vst [vmem:[%s366 + $0x18] sm:$0x1] 0.0
      %409 = vst [vmem:[%s366 + $0x30] sm:$0x1] 0.0
      %410 = vst [vmem:[%s366 + $0x48] sm:$0x1] 0.0
      %411 = vst [vmem:[%s366 + $0x60] sm:$0x1] 0.0
      %412 = vst [vmem:[%s366 + $0x78] sm:$0x1] 0.0
      %413 = vst [vmem:[%s366 + $0x90] sm:$0x1] 0.0
      %414 = vst [vmem:[%s366 + $0xa8] sm:$0x1] 0.0
      %v415 = vrot.slane %v351, 1
      %v416 = vrot.slane %v352, 1
      %v417 = vrot.slane %v353, 1
      %v418 = vrot.slane %v354, 1
      %v419 = vrot.slane %v355, 1
      %v420 = vrot.slane %v356, 1
      %v421 = vrot.slane %v357, 1
      %v422 = vrot.slane %v358, 1
      %431 = vst [vmem:[%s366 + $0x10] sm:$0x7f] %v415
      %432 = vst [vmem:[%s366 + $0x28] sm:$0x7f] %v416
      %433 = vst [vmem:[%s366 + $0x40] sm:$0x7f] %v417
      %434 = vst [vmem:[%s366 + $0x58] sm:$0x7f] %v418
      %435 = vst [vmem:[%s366 + $0x70] sm:$0x7f] %v419
      %436 = vst [vmem:[%s366 + $0x88] sm:$0x7f] %v420
      %437 = vst [vmem:[%s366 + $0xa0] sm:$0x7f] %v421
      %438 = vst [vmem:[%s366 + $0xb8] sm:$0x7f] %v422
      %439 = vst [vmem:[%s366 + $0x17] sm:$0x1] 0.0
      %440 = vst [vmem:[%s366 + $0x2f] sm:$0x1] 0.0
      %441 = vst [vmem:[%s366 + $0x47] sm:$0x1] 0.0
      %442 = vst [vmem:[%s366 + $0x5f] sm:$0x1] 0.0
      %443 = vst [vmem:[%s366 + $0x77] sm:$0x1] 0.0
      %444 = vst [vmem:[%s366 + $0x8f] sm:$0x1] 0.0
      %445 = vst [vmem:[%s366 + $0xa7] sm:$0x1] 0.0
      %446 = vst [vmem:[%s366 + $0xbf] sm:$0x1] 0.0
      %v447 = vld [vmem:[#allocation2] sm:$0xff]
      %v448 = vld [vmem:[#allocation2 + $0x8] sm:$0xff]
      %v449 = vld [vmem:[#allocation2 + $0x10] sm:$0xff]
      %v450 = vld [vmem:[#allocation2 + $0x18] sm:$0xff]
      %v451 = vld [vmem:[#allocation2 + $0x20] sm:$0xff]
      %v452 = vld [vmem:[#allocation2 + $0x28] sm:$0xff]
      %v453 = vld [vmem:[#allocation2 + $0x30] sm:$0xff]
      %v454 = vld [vmem:[#allocation2 + $0x38] sm:$0xff]
      %v455 = vld [vmem:[#allocation2 + $0x40] sm:$0xff]
      %v456 = vld [vmem:[#allocation2 + $0x48] sm:$0xff]
      %v457 = vld [vmem:[#allocation2 + $0x50] sm:$0xff]
      %v458 = vld [vmem:[#allocation2 + $0x58] sm:$0xff]
      %v459 = vld [vmem:[#allocation2 + $0x60] sm:$0xff]
      %v460 = vld [vmem:[#allocation2 + $0x68] sm:$0xff]
      %v461 = vld [vmem:[#allocation2 + $0x70] sm:$0xff]
      %v462 = vld [vmem:[#allocation2 + $0x78] sm:$0xff]
      %v463 = vld [vmem:[#allocation2 + $0x80] sm:$0xff]
      %v464 = vld [vmem:[#allocation2 + $0x88] sm:$0xff]
      %v465 = vld [vmem:[#allocation2 + $0x90] sm:$0xff]
      %v466 = vld [vmem:[#allocation2 + $0x98] sm:$0xff]
      %v467 = vld [vmem:[#allocation2 + $0xa0] sm:$0xff]
      %v468 = vld [vmem:[#allocation2 + $0xa8] sm:$0xff]
      %v469 = vld [vmem:[#allocation2 + $0xb0] sm:$0xff]
      %v470 = vld [vmem:[#allocation2 + $0xb8] sm:$0xff]
      %v471 = vpack.c.bf16 %v450, %v447
      %v472 = vpack.c.bf16 %v451, %v448
      %v473 = vpack.c.bf16 %v452, %v449
      %v474 = vpack.c.bf16 %v456, %v453
      %v475 = vpack.c.bf16 %v457, %v454
      %v476 = vpack.c.bf16 %v458, %v455
      %v477 = vpack.c.bf16 %v462, %v459
      %v478 = vpack.c.bf16 %v463, %v460
      %v479 = vpack.c.bf16 %v464, %v461
      %v480 = vpack.c.bf16 %v468, %v465
      %v481 = vpack.c.bf16 %v469, %v466
      %v482 = vpack.c.bf16 %v470, %v467
      %v483 = vld [vmem:[%s3] sm:$0xf]
      %v484 = vld [vmem:[%s3 + $0x4] sm:$0xf]
      %v485 = vld [vmem:[%s3 + $0x8] sm:$0xf]
      %v486 = vld [vmem:[%s3 + $0xc] sm:$0xf]
      %v487 = vld [vmem:[%s3 + $0x10] sm:$0xf]
      %v488 = vld [vmem:[%s3 + $0x14] sm:$0xf]
      %v489 = vld [vmem:[%s3 + $0x18] sm:$0xf]
      %v490 = vld [vmem:[%s3 + $0x1c] sm:$0xf]
      %v491 = vld [vmem:[%s3 + $0x20] sm:$0xf]
      %v492 = vld [vmem:[%s3 + $0x24] sm:$0xf]
      %v493 = vld [vmem:[%s3 + $0x28] sm:$0xf]
      %v494 = vld [vmem:[%s3 + $0x2c] sm:$0xf]
      %v495 = vld [vmem:[%s3 + $0x30] sm:$0xf]
      %v496 = vld [vmem:[%s3 + $0x34] sm:$0xf]
      %v497 = vld [vmem:[%s3 + $0x38] sm:$0xf]
      %v498 = vld [vmem:[%s3 + $0x3c] sm:$0xf]
      %v499 = vld [vmem:[%s3 + $0x40] sm:$0xf]
      %v500 = vld [vmem:[%s3 + $0x44] sm:$0xf]
      %v501 = vld [vmem:[%s3 + $0x48] sm:$0xf]
      %v502 = vld [vmem:[%s3 + $0x4c] sm:$0xf]
      %v503 = vld [vmem:[%s3 + $0x50] sm:$0xf]
      %v504 = vld [vmem:[%s3 + $0x54] sm:$0xf]
      %v505 = vld [vmem:[%s3 + $0x58] sm:$0xf]
      %v506 = vld [vmem:[%s3 + $0x5c] sm:$0xf]
      %v507 = vld [vmem:[%s3 + $0x60] sm:$0xf]
      %v508 = vld [vmem:[%s3 + $0x64] sm:$0xf]
      %v509 = vld [vmem:[%s3 + $0x68] sm:$0xf]
      %v510 = vld [vmem:[%s3 + $0x6c] sm:$0xf]
      %v511 = vld [vmem:[%s3 + $0x70] sm:$0xf]
      %v512 = vld [vmem:[%s3 + $0x74] sm:$0xf]
      %v513 = vld [vmem:[%s3 + $0x78] sm:$0xf]
      %v514 = vld [vmem:[%s3 + $0x7c] sm:$0xf]
      %v515 = vld [vmem:[%s3 + $0x80] sm:$0xf]
      %v516 = vld [vmem:[%s3 + $0x84] sm:$0xf]
      %v517 = vld [vmem:[%s3 + $0x88] sm:$0xf]
      %v518 = vld [vmem:[%s3 + $0x8c] sm:$0xf]
      %v519 = vld [vmem:[%s3 + $0x90] sm:$0xf]
      %v520 = vld [vmem:[%s3 + $0x94] sm:$0xf]
      %v521 = vld [vmem:[%s3 + $0x98] sm:$0xf]
      %v522 = vld [vmem:[%s3 + $0x9c] sm:$0xf]
      %v523 = vld [vmem:[%s3 + $0xa0] sm:$0xf]
      %v524 = vld [vmem:[%s3 + $0xa4] sm:$0xf]
      %v525 = vld [vmem:[%s3 + $0xa8] sm:$0xf]
      %v526 = vld [vmem:[%s3 + $0xac] sm:$0xf]
      %v527 = vld [vmem:[%s3 + $0xb0] sm:$0xf]
      %v528 = vld [vmem:[%s3 + $0xb4] sm:$0xf]
      %v529 = vld [vmem:[%s3 + $0xb8] sm:$0xf]
      %v530 = vld [vmem:[%s3 + $0xbc] sm:$0xf]
      %v531 = vld [vmem:[%s366] sm:$0xff]
      %v532 = vld [vmem:[%s366 + $0x8] sm:$0xff]
      %v533 = vld [vmem:[%s366 + $0x10] sm:$0xff]
      %v534 = vld [vmem:[%s366 + $0x18] sm:$0xff]
      %v535 = vld [vmem:[%s366 + $0x20] sm:$0xff]
      %v536 = vld [vmem:[%s366 + $0x28] sm:$0xff]
      %v537 = vld [vmem:[%s366 + $0x30] sm:$0xff]
      %v538 = vld [vmem:[%s366 + $0x38] sm:$0xff]
      %v539 = vld [vmem:[%s366 + $0x40] sm:$0xff]
      %v540 = vld [vmem:[%s366 + $0x48] sm:$0xff]
      %v541 = vld [vmem:[%s366 + $0x50] sm:$0xff]
      %v542 = vld [vmem:[%s366 + $0x58] sm:$0xff]
      %v543 = vld [vmem:[%s366 + $0x60] sm:$0xff]
      %v544 = vld [vmem:[%s366 + $0x68] sm:$0xff]
      %v545 = vld [vmem:[%s366 + $0x70] sm:$0xff]
      %v546 = vld [vmem:[%s366 + $0x78] sm:$0xff]
      %v547 = vld [vmem:[%s366 + $0x80] sm:$0xff]
      %v548 = vld [vmem:[%s366 + $0x88] sm:$0xff]
      %v549 = vld [vmem:[%s366 + $0x90] sm:$0xff]
      %v550 = vld [vmem:[%s366 + $0x98] sm:$0xff]
      %v551 = vld [vmem:[%s366 + $0xa0] sm:$0xff]
      %v552 = vld [vmem:[%s366 + $0xa8] sm:$0xff]
      %v553 = vld [vmem:[%s366 + $0xb0] sm:$0xff]
      %v554 = vld [vmem:[%s366 + $0xb8] sm:$0xff]
      %v555 = vpack.c.bf16 %v534, %v531
      %v556 = vpack.c.bf16 %v535, %v532
      %v557 = vpack.c.bf16 %v536, %v533
      %v558 = vpack.c.bf16 %v540, %v537
      %v559 = vpack.c.bf16 %v541, %v538
      %v560 = vpack.c.bf16 %v542, %v539
      %v561 = vpack.c.bf16 %v546, %v543
      %v562 = vpack.c.bf16 %v547, %v544
      %v563 = vpack.c.bf16 %v548, %v545
      %v564 = vpack.c.bf16 %v552, %v549
      %v565 = vpack.c.bf16 %v553, %v550
      %v566 = vpack.c.bf16 %v554, %v551
      %s567 = scalar_lea.vmem %s3, 192
      %v568 = vld [vmem:[%s567] sm:$0xf]
      %v569 = vld [vmem:[%s567 + $0x4] sm:$0xf]
      %v570 = vld [vmem:[%s567 + $0x8] sm:$0xf]
      %v571 = vld [vmem:[%s567 + $0xc] sm:$0xf]
      %v572 = vld [vmem:[%s567 + $0x10] sm:$0xf]
      %v573 = vld [vmem:[%s567 + $0x14] sm:$0xf]
      %v574 = vld [vmem:[%s567 + $0x18] sm:$0xf]
      %v575 = vld [vmem:[%s567 + $0x1c] sm:$0xf]
      %v576 = vld [vmem:[%s567 + $0x20] sm:$0xf]
      %v577 = vld [vmem:[%s567 + $0x24] sm:$0xf]
      %v578 = vld [vmem:[%s567 + $0x28] sm:$0xf]
      %v579 = vld [vmem:[%s567 + $0x2c] sm:$0xf]
      %v580 = vld [vmem:[%s567 + $0x30] sm:$0xf]
      %v581 = vld [vmem:[%s567 + $0x34] sm:$0xf]
      %v582 = vld [vmem:[%s567 + $0x38] sm:$0xf]
      %v583 = vld [vmem:[%s567 + $0x3c] sm:$0xf]
      %v584 = vld [vmem:[%s567 + $0x40] sm:$0xf]
      %v585 = vld [vmem:[%s567 + $0x44] sm:$0xf]
      %v586 = vld [vmem:[%s567 + $0x48] sm:$0xf]
      %v587 = vld [vmem:[%s567 + $0x4c] sm:$0xf]
      %v588 = vld [vmem:[%s567 + $0x50] sm:$0xf]
      %v589 = vld [vmem:[%s567 + $0x54] sm:$0xf]
      %v590 = vld [vmem:[%s567 + $0x58] sm:$0xf]
      %v591 = vld [vmem:[%s567 + $0x5c] sm:$0xf]
      %v592 = vld [vmem:[%s567 + $0x60] sm:$0xf]
      %v593 = vld [vmem:[%s567 + $0x64] sm:$0xf]
      %v594 = vld [vmem:[%s567 + $0x68] sm:$0xf]
      %v595 = vld [vmem:[%s567 + $0x6c] sm:$0xf]
      %v596 = vld [vmem:[%s567 + $0x70] sm:$0xf]
      %v597 = vld [vmem:[%s567 + $0x74] sm:$0xf]
      %v598 = vld [vmem:[%s567 + $0x78] sm:$0xf]
      %v599 = vld [vmem:[%s567 + $0x7c] sm:$0xf]
      %v600 = vld [vmem:[%s567 + $0x80] sm:$0xf]
      %v601 = vld [vmem:[%s567 + $0x84] sm:$0xf]
      %v602 = vld [vmem:[%s567 + $0x88] sm:$0xf]
      %v603 = vld [vmem:[%s567 + $0x8c] sm:$0xf]
      %v604 = vld [vmem:[%s567 + $0x90] sm:$0xf]
      %v605 = vld [vmem:[%s567 + $0x94] sm:$0xf]
      %v606 = vld [vmem:[%s567 + $0x98] sm:$0xf]
      %v607 = vld [vmem:[%s567 + $0x9c] sm:$0xf]
      %v608 = vld [vmem:[%s567 + $0xa0] sm:$0xf]
      %v609 = vld [vmem:[%s567 + $0xa4] sm:$0xf]
      %v610 = vld [vmem:[%s567 + $0xa8] sm:$0xf]
      %v611 = vld [vmem:[%s567 + $0xac] sm:$0xf]
      %v612 = vld [vmem:[%s567 + $0xb0] sm:$0xf]
      %v613 = vld [vmem:[%s567 + $0xb4] sm:$0xf]
      %v614 = vld [vmem:[%s567 + $0xb8] sm:$0xf]
      %v615 = vld [vmem:[%s567 + $0xbc] sm:$0xf]
      %v664 = vunpack.c.l.b16 %v568
      %v665 = vunpack.c.l.b16 %v569
      %v666 = vunpack.c.l.b16 %v570
      %v667 = vunpack.c.l.b16 %v571
      %v668 = vunpack.c.l.b16 %v572
      %v669 = vunpack.c.l.b16 %v573
      %v670 = vunpack.c.l.b16 %v574
      %v671 = vunpack.c.l.b16 %v575
      %v672 = vunpack.c.l.b16 %v576
      %v673 = vunpack.c.l.b16 %v577
      %v674 = vunpack.c.l.b16 %v578
      %v675 = vunpack.c.l.b16 %v579
      %v676 = vunpack.c.l.b16 %v580
      %v677 = vunpack.c.l.b16 %v581
      %v678 = vunpack.c.l.b16 %v582
      %v679 = vunpack.c.l.b16 %v583
      %v680 = vunpack.c.l.b16 %v584
      %v681 = vunpack.c.l.b16 %v585
      %v682 = vunpack.c.l.b16 %v586
      %v683 = vunpack.c.l.b16 %v587
      %v684 = vunpack.c.l.b16 %v588
      %v685 = vunpack.c.l.b16 %v589
      %v686 = vunpack.c.l.b16 %v590
      %v687 = vunpack.c.l.b16 %v591
      %v688 = vunpack.c.l.b16 %v592
      %v689 = vunpack.c.l.b16 %v593
      %v690 = vunpack.c.l.b16 %v594
      %v691 = vunpack.c.l.b16 %v595
      %v692 = vunpack.c.l.b16 %v596
      %v693 = vunpack.c.l.b16 %v597
      %v694 = vunpack.c.l.b16 %v598
      %v695 = vunpack.c.l.b16 %v599
      %v696 = vunpack.c.l.b16 %v600
      %v697 = vunpack.c.l.b16 %v601
      %v698 = vunpack.c.l.b16 %v602
      %v699 = vunpack.c.l.b16 %v603
      %v700 = vunpack.c.l.b16 %v604
      %v701 = vunpack.c.l.b16 %v605
      %v702 = vunpack.c.l.b16 %v606
      %v703 = vunpack.c.l.b16 %v607
      %v704 = vunpack.c.l.b16 %v608
      %v705 = vunpack.c.l.b16 %v609
      %v706 = vunpack.c.l.b16 %v610
      %v707 = vunpack.c.l.b16 %v611
      %v708 = vunpack.c.l.b16 %v612
      %v709 = vunpack.c.l.b16 %v613
      %v710 = vunpack.c.l.b16 %v614
      %v711 = vunpack.c.l.b16 %v615
      %v712 = vpack.c.b16 %v665, %v664
      %v713 = vpack.c.b16 %v667, %v666
      %v714 = vpack.c.b16 %v669, %v668
      %v715 = vpack.c.b16 %v671, %v670
      %v716 = vpack.c.b16 %v673, %v672
      %v717 = vpack.c.b16 %v675, %v674
      %v718 = vpack.c.b16 %v677, %v676
      %v719 = vpack.c.b16 %v679, %v678
      %v720 = vpack.c.b16 %v681, %v680
      %v721 = vpack.c.b16 %v683, %v682
      %v722 = vpack.c.b16 %v685, %v684
      %v723 = vpack.c.b16 %v687, %v686
      %v724 = vpack.c.b16 %v689, %v688
      %v725 = vpack.c.b16 %v691, %v690
      %v726 = vpack.c.b16 %v693, %v692
      %v727 = vpack.c.b16 %v695, %v694
      %v728 = vpack.c.b16 %v697, %v696
      %v729 = vpack.c.b16 %v699, %v698
      %v730 = vpack.c.b16 %v701, %v700
      %v731 = vpack.c.b16 %v703, %v702
      %v732 = vpack.c.b16 %v705, %v704
      %v733 = vpack.c.b16 %v707, %v706
      %v734 = vpack.c.b16 %v709, %v708
      %v735 = vpack.c.b16 %v711, %v710
      %760 = vmatpush.bf16.msra.mxu0 %v719
      %761 = vmatpush.bf16.msra.mxu0 %v718
      %762 = vmatpush.bf16.msra.mxu0 %v717
      %763 = vmatpush.bf16.msra.mxu0 %v716
      %764 = vmatpush.bf16.msra.mxu0 %v715
      %765 = vmatpush.bf16.msra.mxu0 %v714
      %766 = vmatpush.bf16.msra.mxu0 %v713
      %767 = vmatpush.bf16.msra.mxu0 %v712
      %768 = vmatmul.bf16.gmra.mxu0 %v555
      %v769 = vpop.f32.mrf.mxu0
      %v770 = vadd.f32 0.0, %v769
      %v771 = vpop.f32.mrf.mxu0
      %v772 = vadd.f32 0.0, %v771
      %773 = vmatmul.bf16.gmra.mxu0 %v558
      %v774 = vpop.f32.mrf.mxu0
      %v775 = vadd.f32 0.0, %v774
      %v776 = vpop.f32.mrf.mxu0
      %v777 = vadd.f32 0.0, %v776
      %778 = vmatmul.bf16.gmra.mxu0 %v561
      %v779 = vpop.f32.mrf.mxu0
      %v780 = vadd.f32 0.0, %v779
      %v781 = vpop.f32.mrf.mxu0
      %v782 = vadd.f32 0.0, %v781
      %783 = vmatmul.bf16.gmra.mxu0 %v564
      %v784 = vpop.f32.mrf.mxu0
      %v785 = vadd.f32 0.0, %v784
      %v786 = vpop.f32.mrf.mxu0
      %v787 = vadd.f32 0.0, %v786
      %788 = vdwg.mxu0
      %789 = vmatpush.bf16.msra.mxu0 %v727
      %790 = vmatpush.bf16.msra.mxu0 %v726
      %791 = vmatpush.bf16.msra.mxu0 %v725
      %792 = vmatpush.bf16.msra.mxu0 %v724
      %793 = vmatpush.bf16.msra.mxu0 %v723
      %794 = vmatpush.bf16.msra.mxu0 %v722
      %795 = vmatpush.bf16.msra.mxu0 %v721
      %796 = vmatpush.bf16.msra.mxu0 %v720
      %797 = vmatmul.bf16.gmra.mxu0 %v556
      %v798 = vpop.f32.mrf.mxu0
      %v799 = vadd.f32 %v770, %v798
      %v800 = vpop.f32.mrf.mxu0
      %v801 = vadd.f32 %v772, %v800
      %802 = vmatmul.bf16.gmra.mxu0 %v559
      %v803 = vpop.f32.mrf.mxu0
      %v804 = vadd.f32 %v775, %v803
      %v805 = vpop.f32.mrf.mxu0
      %v806 = vadd.f32 %v777, %v805
      %807 = vmatmul.bf16.gmra.mxu0 %v562
      %v808 = vpop.f32.mrf.mxu0
      %v809 = vadd.f32 %v780, %v808
      %v810 = vpop.f32.mrf.mxu0
      %v811 = vadd.f32 %v782, %v810
      %812 = vmatmul.bf16.gmra.mxu0 %v565
      %v813 = vpop.f32.mrf.mxu0
      %v814 = vadd.f32 %v785, %v813
      %v815 = vpop.f32.mrf.mxu0
      %v816 = vadd.f32 %v787, %v815
      %817 = vdwg.mxu0
      %818 = vmatpush.bf16.msra.mxu0 %v735
      %819 = vmatpush.bf16.msra.mxu0 %v734
      %820 = vmatpush.bf16.msra.mxu0 %v733
      %821 = vmatpush.bf16.msra.mxu0 %v732
      %822 = vmatpush.bf16.msra.mxu0 %v731
      %823 = vmatpush.bf16.msra.mxu0 %v730
      %824 = vmatpush.bf16.msra.mxu0 %v729
      %825 = vmatpush.bf16.msra.mxu0 %v728
      %826 = vmatmul.bf16.gmra.mxu0 %v557
      %v827 = vpop.f32.mrf.mxu0
      %v828 = vadd.f32 %v799, %v827
      %v829 = vpop.f32.mrf.mxu0
      %v830 = vadd.f32 %v801, %v829
      %831 = vmatmul.bf16.gmra.mxu0 %v560
      %v832 = vpop.f32.mrf.mxu0
      %v833 = vadd.f32 %v804, %v832
      %v834 = vpop.f32.mrf.mxu0
      %v835 = vadd.f32 %v806, %v834
      %836 = vmatmul.bf16.gmra.mxu0 %v563
      %v837 = vpop.f32.mrf.mxu0
      %v838 = vadd.f32 %v809, %v837
      %v839 = vpop.f32.mrf.mxu0
      %v840 = vadd.f32 %v811, %v839
      %841 = vmatmul.bf16.gmra.mxu0 %v566
      %v842 = vpop.f32.mrf.mxu0
      %v843 = vadd.f32 %v814, %v842
      %v844 = vpop.f32.mrf.mxu0
      %v845 = vadd.f32 %v816, %v844
      %846 = vdwg.mxu0
      %v895 = vunpack.c.l.b16 %v483
      %v896 = vunpack.c.l.b16 %v484
      %v897 = vunpack.c.l.b16 %v485
      %v898 = vunpack.c.l.b16 %v486
      %v899 = vunpack.c.l.b16 %v487
      %v900 = vunpack.c.l.b16 %v488
      %v901 = vunpack.c.l.b16 %v489
      %v902 = vunpack.c.l.b16 %v490
      %v903 = vunpack.c.l.b16 %v491
      %v904 = vunpack.c.l.b16 %v492
      %v905 = vunpack.c.l.b16 %v493
      %v906 = vunpack.c.l.b16 %v494
      %v907 = vunpack.c.l.b16 %v495
      %v908 = vunpack.c.l.b16 %v496
      %v909 = vunpack.c.l.b16 %v497
      %v910 = vunpack.c.l.b16 %v498
      %v911 = vunpack.c.l.b16 %v499
      %v912 = vunpack.c.l.b16 %v500
      %v913 = vunpack.c.l.b16 %v501
      %v914 = vunpack.c.l.b16 %v502
      %v915 = vunpack.c.l.b16 %v503
      %v916 = vunpack.c.l.b16 %v504
      %v917 = vunpack.c.l.b16 %v505
      %v918 = vunpack.c.l.b16 %v506
      %v919 = vunpack.c.l.b16 %v507
      %v920 = vunpack.c.l.b16 %v508
      %v921 = vunpack.c.l.b16 %v509
      %v922 = vunpack.c.l.b16 %v510
      %v923 = vunpack.c.l.b16 %v511
      %v924 = vunpack.c.l.b16 %v512
      %v925 = vunpack.c.l.b16 %v513
      %v926 = vunpack.c.l.b16 %v514
      %v927 = vunpack.c.l.b16 %v515
      %v928 = vunpack.c.l.b16 %v516
      %v929 = vunpack.c.l.b16 %v517
      %v930 = vunpack.c.l.b16 %v518
      %v931 = vunpack.c.l.b16 %v519
      %v932 = vunpack.c.l.b16 %v520
      %v933 = vunpack.c.l.b16 %v521
      %v934 = vunpack.c.l.b16 %v522
      %v935 = vunpack.c.l.b16 %v523
      %v936 = vunpack.c.l.b16 %v524
      %v937 = vunpack.c.l.b16 %v525
      %v938 = vunpack.c.l.b16 %v526
      %v939 = vunpack.c.l.b16 %v527
      %v940 = vunpack.c.l.b16 %v528
      %v941 = vunpack.c.l.b16 %v529
      %v942 = vunpack.c.l.b16 %v530
      %v943 = vpack.c.b16 %v896, %v895
      %v944 = vpack.c.b16 %v898, %v897
      %v945 = vpack.c.b16 %v900, %v899
      %v946 = vpack.c.b16 %v902, %v901
      %v947 = vpack.c.b16 %v904, %v903
      %v948 = vpack.c.b16 %v906, %v905
      %v949 = vpack.c.b16 %v908, %v907
      %v950 = vpack.c.b16 %v910, %v909
      %v951 = vpack.c.b16 %v912, %v911
      %v952 = vpack.c.b16 %v914, %v913
      %v953 = vpack.c.b16 %v916, %v915
      %v954 = vpack.c.b16 %v918, %v917
      %v955 = vpack.c.b16 %v920, %v919
      %v956 = vpack.c.b16 %v922, %v921
      %v957 = vpack.c.b16 %v924, %v923
      %v958 = vpack.c.b16 %v926, %v925
      %v959 = vpack.c.b16 %v928, %v927
      %v960 = vpack.c.b16 %v930, %v929
      %v961 = vpack.c.b16 %v932, %v931
      %v962 = vpack.c.b16 %v934, %v933
      %v963 = vpack.c.b16 %v936, %v935
      %v964 = vpack.c.b16 %v938, %v937
      %v965 = vpack.c.b16 %v940, %v939
      %v966 = vpack.c.b16 %v942, %v941
      %991 = vmatpush.bf16.msra.mxu0 %v950
      %992 = vmatpush.bf16.msra.mxu0 %v949
      %993 = vmatpush.bf16.msra.mxu0 %v948
      %994 = vmatpush.bf16.msra.mxu0 %v947
      %995 = vmatpush.bf16.msra.mxu0 %v946
      %996 = vmatpush.bf16.msra.mxu0 %v945
      %997 = vmatpush.bf16.msra.mxu0 %v944
      %998 = vmatpush.bf16.msra.mxu0 %v943
      %999 = vmatmul.bf16.gmra.mxu0 %v471
      %v1000 = vpop.f32.mrf.mxu0
      %v1001 = vadd.f32 %v828, %v1000
      %v1002 = vpop.f32.mrf.mxu0
      %v1003 = vadd.f32 %v830, %v1002
      %1004 = vmatmul.bf16.gmra.mxu0 %v474
      %v1005 = vpop.f32.mrf.mxu0
      %v1006 = vadd.f32 %v833, %v1005
      %v1007 = vpop.f32.mrf.mxu0
      %v1008 = vadd.f32 %v835, %v1007
      %1009 = vmatmul.bf16.gmra.mxu0 %v477
      %v1010 = vpop.f32.mrf.mxu0
      %v1011 = vadd.f32 %v838, %v1010
      %v1012 = vpop.f32.mrf.mxu0
      %v1013 = vadd.f32 %v840, %v1012
      %1014 = vmatmul.bf16.gmra.mxu0 %v480
      %v1015 = vpop.f32.mrf.mxu0
      %v1016 = vadd.f32 %v843, %v1015
      %v1017 = vpop.f32.mrf.mxu0
      %v1018 = vadd.f32 %v845, %v1017
      %1019 = vdwg.mxu0
      %1020 = vmatpush.bf16.msra.mxu0 %v958
      %1021 = vmatpush.bf16.msra.mxu0 %v957
      %1022 = vmatpush.bf16.msra.mxu0 %v956
      %1023 = vmatpush.bf16.msra.mxu0 %v955
      %1024 = vmatpush.bf16.msra.mxu0 %v954
      %1025 = vmatpush.bf16.msra.mxu0 %v953
      %1026 = vmatpush.bf16.msra.mxu0 %v952
      %1027 = vmatpush.bf16.msra.mxu0 %v951
      %1028 = vmatmul.bf16.gmra.mxu0 %v472
      %v1029 = vpop.f32.mrf.mxu0
      %v1030 = vadd.f32 %v1001, %v1029
      %v1031 = vpop.f32.mrf.mxu0
      %v1032 = vadd.f32 %v1003, %v1031
      %1033 = vmatmul.bf16.gmra.mxu0 %v475
      %v1034 = vpop.f32.mrf.mxu0
      %v1035 = vadd.f32 %v1006, %v1034
      %v1036 = vpop.f32.mrf.mxu0
      %v1037 = vadd.f32 %v1008, %v1036
      %1038 = vmatmul.bf16.gmra.mxu0 %v478
      %v1039 = vpop.f32.mrf.mxu0
      %v1040 = vadd.f32 %v1011, %v1039
      %v1041 = vpop.f32.mrf.mxu0
      %v1042 = vadd.f32 %v1013, %v1041
      %1043 = vmatmul.bf16.gmra.mxu0 %v481
      %v1044 = vpop.f32.mrf.mxu0
      %v1045 = vadd.f32 %v1016, %v1044
      %v1046 = vpop.f32.mrf.mxu0
      %v1047 = vadd.f32 %v1018, %v1046
      %1048 = vdwg.mxu0
      %1049 = vmatpush.bf16.msra.mxu0 %v966
      %1050 = vmatpush.bf16.msra.mxu0 %v965
      %1051 = vmatpush.bf16.msra.mxu0 %v964
      %1052 = vmatpush.bf16.msra.mxu0 %v963
      %1053 = vmatpush.bf16.msra.mxu0 %v962
      %1054 = vmatpush.bf16.msra.mxu0 %v961
      %1055 = vmatpush.bf16.msra.mxu0 %v960
      %1056 = vmatpush.bf16.msra.mxu0 %v959
      %1057 = vmatmul.bf16.gmra.mxu0 %v473
      %v1058 = vpop.f32.mrf.mxu0
      %v1059 = vadd.f32 %v1030, %v1058
      %v1060 = vpop.f32.mrf.mxu0
      %v1061 = vadd.f32 %v1032, %v1060
      %1062 = vmatmul.bf16.gmra.mxu0 %v476
      %v1063 = vpop.f32.mrf.mxu0
      %v1064 = vadd.f32 %v1035, %v1063
      %v1065 = vpop.f32.mrf.mxu0
      %v1066 = vadd.f32 %v1037, %v1065
      %1067 = vmatmul.bf16.gmra.mxu0 %v479
      %v1068 = vpop.f32.mrf.mxu0
      %v1069 = vadd.f32 %v1040, %v1068
      %v1070 = vpop.f32.mrf.mxu0
      %v1071 = vadd.f32 %v1042, %v1070
      %1072 = vmatmul.bf16.gmra.mxu0 %v482
      %v1073 = vpop.f32.mrf.mxu0
      %v1074 = vadd.f32 %v1045, %v1073
      %v1075 = vpop.f32.mrf.mxu0
      %v1076 = vadd.f32 %v1047, %v1075
      %1077 = vdwg.mxu0
      %s1078 = scalar_lea.vmem [#allocation2], 48
      %v1079 = vld [vmem:[%s1078] sm:$0xff]
      %v1080 = vld [vmem:[%s1078 + $0x8] sm:$0xff]
      %v1081 = vld [vmem:[%s1078 + $0x10] sm:$0xff]
      %v1082 = vld [vmem:[%s1078 + $0x18] sm:$0xff]
      %v1083 = vld [vmem:[%s1078 + $0x20] sm:$0xff]
      %v1084 = vld [vmem:[%s1078 + $0x28] sm:$0xff]
      %v1085 = vld [vmem:[%s1078 + $0x30] sm:$0xff]
      %v1086 = vld [vmem:[%s1078 + $0x38] sm:$0xff]
      %v1087 = vld [vmem:[%s1078 + $0x40] sm:$0xff]
      %v1088 = vld [vmem:[%s1078 + $0x48] sm:$0xff]
      %v1089 = vld [vmem:[%s1078 + $0x50] sm:$0xff]
      %v1090 = vld [vmem:[%s1078 + $0x58] sm:$0xff]
      %v1091 = vld [vmem:[%s1078 + $0x60] sm:$0xff]
      %v1092 = vld [vmem:[%s1078 + $0x68] sm:$0xff]
      %v1093 = vld [vmem:[%s1078 + $0x70] sm:$0xff]
      %v1094 = vld [vmem:[%s1078 + $0x78] sm:$0xff]
      %v1095 = vld [vmem:[%s1078 + $0x80] sm:$0xff]
      %v1096 = vld [vmem:[%s1078 + $0x88] sm:$0xff]
      %v1097 = vld [vmem:[%s1078 + $0x90] sm:$0xff]
      %v1098 = vld [vmem:[%s1078 + $0x98] sm:$0xff]
      %v1099 = vld [vmem:[%s1078 + $0xa0] sm:$0xff]
      %v1100 = vld [vmem:[%s1078 + $0xa8] sm:$0xff]
      %v1101 = vld [vmem:[%s1078 + $0xb0] sm:$0xff]
      %v1102 = vld [vmem:[%s1078 + $0xb8] sm:$0xff]
      %v1103 = vpack.c.bf16 %v1082, %v1079
      %v1104 = vpack.c.bf16 %v1083, %v1080
      %v1105 = vpack.c.bf16 %v1084, %v1081
      %v1106 = vpack.c.bf16 %v1088, %v1085
      %v1107 = vpack.c.bf16 %v1089, %v1086
      %v1108 = vpack.c.bf16 %v1090, %v1087
      %v1109 = vpack.c.bf16 %v1094, %v1091
      %v1110 = vpack.c.bf16 %v1095, %v1092
      %v1111 = vpack.c.bf16 %v1096, %v1093
      %v1112 = vpack.c.bf16 %v1100, %v1097
      %v1113 = vpack.c.bf16 %v1101, %v1098
      %v1114 = vpack.c.bf16 %v1102, %v1099
      %s1115 = scalar_lea.vmem %s3, 384
      %v1116 = vld [vmem:[%s1115] sm:$0xf]
      %v1117 = vld [vmem:[%s1115 + $0x4] sm:$0xf]
      %v1118 = vld [vmem:[%s1115 + $0x8] sm:$0xf]
      %v1119 = vld [vmem:[%s1115 + $0xc] sm:$0xf]
      %v1120 = vld [vmem:[%s1115 + $0x10] sm:$0xf]
      %v1121 = vld [vmem:[%s1115 + $0x14] sm:$0xf]
      %v1122 = vld [vmem:[%s1115 + $0x18] sm:$0xf]
      %v1123 = vld [vmem:[%s1115 + $0x1c] sm:$0xf]
      %v1124 = vld [vmem:[%s1115 + $0x20] sm:$0xf]
      %v1125 = vld [vmem:[%s1115 + $0x24] sm:$0xf]
      %v1126 = vld [vmem:[%s1115 + $0x28] sm:$0xf]
      %v1127 = vld [vmem:[%s1115 + $0x2c] sm:$0xf]
      %v1128 = vld [vmem:[%s1115 + $0x30] sm:$0xf]
      %v1129 = vld [vmem:[%s1115 + $0x34] sm:$0xf]
      %v1130 = vld [vmem:[%s1115 + $0x38] sm:$0xf]
      %v1131 = vld [vmem:[%s1115 + $0x3c] sm:$0xf]
      %v1132 = vld [vmem:[%s1115 + $0x40] sm:$0xf]
      %v1133 = vld [vmem:[%s1115 + $0x44] sm:$0xf]
      %v1134 = vld [vmem:[%s1115 + $0x48] sm:$0xf]
      %v1135 = vld [vmem:[%s1115 + $0x4c] sm:$0xf]
      %v1136 = vld [vmem:[%s1115 + $0x50] sm:$0xf]
      %v1137 = vld [vmem:[%s1115 + $0x54] sm:$0xf]
      %v1138 = vld [vmem:[%s1115 + $0x58] sm:$0xf]
      %v1139 = vld [vmem:[%s1115 + $0x5c] sm:$0xf]
      %v1140 = vld [vmem:[%s1115 + $0x60] sm:$0xf]
      %v1141 = vld [vmem:[%s1115 + $0x64] sm:$0xf]
      %v1142 = vld [vmem:[%s1115 + $0x68] sm:$0xf]
      %v1143 = vld [vmem:[%s1115 + $0x6c] sm:$0xf]
      %v1144 = vld [vmem:[%s1115 + $0x70] sm:$0xf]
      %v1145 = vld [vmem:[%s1115 + $0x74] sm:$0xf]
      %v1146 = vld [vmem:[%s1115 + $0x78] sm:$0xf]
      %v1147 = vld [vmem:[%s1115 + $0x7c] sm:$0xf]
      %v1148 = vld [vmem:[%s1115 + $0x80] sm:$0xf]
      %v1149 = vld [vmem:[%s1115 + $0x84] sm:$0xf]
      %v1150 = vld [vmem:[%s1115 + $0x88] sm:$0xf]
      %v1151 = vld [vmem:[%s1115 + $0x8c] sm:$0xf]
      %v1152 = vld [vmem:[%s1115 + $0x90] sm:$0xf]
      %v1153 = vld [vmem:[%s1115 + $0x94] sm:$0xf]
      %v1154 = vld [vmem:[%s1115 + $0x98] sm:$0xf]
      %v1155 = vld [vmem:[%s1115 + $0x9c] sm:$0xf]
      %v1156 = vld [vmem:[%s1115 + $0xa0] sm:$0xf]
      %v1157 = vld [vmem:[%s1115 + $0xa4] sm:$0xf]
      %v1158 = vld [vmem:[%s1115 + $0xa8] sm:$0xf]
      %v1159 = vld [vmem:[%s1115 + $0xac] sm:$0xf]
      %v1160 = vld [vmem:[%s1115 + $0xb0] sm:$0xf]
      %v1161 = vld [vmem:[%s1115 + $0xb4] sm:$0xf]
      %v1162 = vld [vmem:[%s1115 + $0xb8] sm:$0xf]
      %v1163 = vld [vmem:[%s1115 + $0xbc] sm:$0xf]
      %v1212 = vunpack.c.l.b16 %v1116
      %v1213 = vunpack.c.l.b16 %v1117
      %v1214 = vunpack.c.l.b16 %v1118
      %v1215 = vunpack.c.l.b16 %v1119
      %v1216 = vunpack.c.l.b16 %v1120
      %v1217 = vunpack.c.l.b16 %v1121
      %v1218 = vunpack.c.l.b16 %v1122
      %v1219 = vunpack.c.l.b16 %v1123
      %v1220 = vunpack.c.l.b16 %v1124
      %v1221 = vunpack.c.l.b16 %v1125
      %v1222 = vunpack.c.l.b16 %v1126
      %v1223 = vunpack.c.l.b16 %v1127
      %v1224 = vunpack.c.l.b16 %v1128
      %v1225 = vunpack.c.l.b16 %v1129
      %v1226 = vunpack.c.l.b16 %v1130
      %v1227 = vunpack.c.l.b16 %v1131
      %v1228 = vunpack.c.l.b16 %v1132
      %v1229 = vunpack.c.l.b16 %v1133
      %v1230 = vunpack.c.l.b16 %v1134
      %v1231 = vunpack.c.l.b16 %v1135
      %v1232 = vunpack.c.l.b16 %v1136
      %v1233 = vunpack.c.l.b16 %v1137
      %v1234 = vunpack.c.l.b16 %v1138
      %v1235 = vunpack.c.l.b16 %v1139
      %v1236 = vunpack.c.l.b16 %v1140
      %v1237 = vunpack.c.l.b16 %v1141
      %v1238 = vunpack.c.l.b16 %v1142
      %v1239 = vunpack.c.l.b16 %v1143
      %v1240 = vunpack.c.l.b16 %v1144
      %v1241 = vunpack.c.l.b16 %v1145
      %v1242 = vunpack.c.l.b16 %v1146
      %v1243 = vunpack.c.l.b16 %v1147
      %v1244 = vunpack.c.l.b16 %v1148
      %v1245 = vunpack.c.l.b16 %v1149
      %v1246 = vunpack.c.l.b16 %v1150
      %v1247 = vunpack.c.l.b16 %v1151
      %v1248 = vunpack.c.l.b16 %v1152
      %v1249 = vunpack.c.l.b16 %v1153
      %v1250 = vunpack.c.l.b16 %v1154
      %v1251 = vunpack.c.l.b16 %v1155
      %v1252 = vunpack.c.l.b16 %v1156
      %v1253 = vunpack.c.l.b16 %v1157
      %v1254 = vunpack.c.l.b16 %v1158
      %v1255 = vunpack.c.l.b16 %v1159
      %v1256 = vunpack.c.l.b16 %v1160
      %v1257 = vunpack.c.l.b16 %v1161
      %v1258 = vunpack.c.l.b16 %v1162
      %v1259 = vunpack.c.l.b16 %v1163
      %v1260 = vpack.c.b16 %v1213, %v1212
      %v1261 = vpack.c.b16 %v1215, %v1214
      %v1262 = vpack.c.b16 %v1217, %v1216
      %v1263 = vpack.c.b16 %v1219, %v1218
      %v1264 = vpack.c.b16 %v1221, %v1220
      %v1265 = vpack.c.b16 %v1223, %v1222
      %v1266 = vpack.c.b16 %v1225, %v1224
      %v1267 = vpack.c.b16 %v1227, %v1226
      %v1268 = vpack.c.b16 %v1229, %v1228
      %v1269 = vpack.c.b16 %v1231, %v1230
      %v1270 = vpack.c.b16 %v1233, %v1232
      %v1271 = vpack.c.b16 %v1235, %v1234
      %v1272 = vpack.c.b16 %v1237, %v1236
      %v1273 = vpack.c.b16 %v1239, %v1238
      %v1274 = vpack.c.b16 %v1241, %v1240
      %v1275 = vpack.c.b16 %v1243, %v1242
      %v1276 = vpack.c.b16 %v1245, %v1244
      %v1277 = vpack.c.b16 %v1247, %v1246
      %v1278 = vpack.c.b16 %v1249, %v1248
      %v1279 = vpack.c.b16 %v1251, %v1250
      %v1280 = vpack.c.b16 %v1253, %v1252
      %v1281 = vpack.c.b16 %v1255, %v1254
      %v1282 = vpack.c.b16 %v1257, %v1256
      %v1283 = vpack.c.b16 %v1259, %v1258
      %1308 = vmatpush.bf16.msra.mxu0 %v1267
      %1309 = vmatpush.bf16.msra.mxu0 %v1266
      %1310 = vmatpush.bf16.msra.mxu0 %v1265
      %1311 = vmatpush.bf16.msra.mxu0 %v1264
      %1312 = vmatpush.bf16.msra.mxu0 %v1263
      %1313 = vmatpush.bf16.msra.mxu0 %v1262
      %1314 = vmatpush.bf16.msra.mxu0 %v1261
      %1315 = vmatpush.bf16.msra.mxu0 %v1260
      %1316 = vmatmul.bf16.gmra.mxu0 %v1103
      %v1317 = vpop.f32.mrf.mxu0
      %v1318 = vadd.f32 0.0, %v1317
      %v1319 = vpop.f32.mrf.mxu0
      %v1320 = vadd.f32 0.0, %v1319
      %1321 = vmatmul.bf16.gmra.mxu0 %v1106
      %v1322 = vpop.f32.mrf.mxu0
      %v1323 = vadd.f32 0.0, %v1322
      %v1324 = vpop.f32.mrf.mxu0
      %v1325 = vadd.f32 0.0, %v1324
      %1326 = vmatmul.bf16.gmra.mxu0 %v1109
      %v1327 = vpop.f32.mrf.mxu0
      %v1328 = vadd.f32 0.0, %v1327
      %v1329 = vpop.f32.mrf.mxu0
      %v1330 = vadd.f32 0.0, %v1329
      %1331 = vmatmul.bf16.gmra.mxu0 %v1112
      %v1332 = vpop.f32.mrf.mxu0
      %v1333 = vadd.f32 0.0, %v1332
      %v1334 = vpop.f32.mrf.mxu0
      %v1335 = vadd.f32 0.0, %v1334
      %1336 = vdwg.mxu0
      %1337 = vmatpush.bf16.msra.mxu0 %v1275
      %1338 = vmatpush.bf16.msra.mxu0 %v1274
      %1339 = vmatpush.bf16.msra.mxu0 %v1273
      %1340 = vmatpush.bf16.msra.mxu0 %v1272
      %1341 = vmatpush.bf16.msra.mxu0 %v1271
      %1342 = vmatpush.bf16.msra.mxu0 %v1270
      %1343 = vmatpush.bf16.msra.mxu0 %v1269
      %1344 = vmatpush.bf16.msra.mxu0 %v1268
      %1345 = vmatmul.bf16.gmra.mxu0 %v1104
      %v1346 = vpop.f32.mrf.mxu0
      %v1347 = vadd.f32 %v1318, %v1346
      %v1348 = vpop.f32.mrf.mxu0
      %v1349 = vadd.f32 %v1320, %v1348
      %1350 = vmatmul.bf16.gmra.mxu0 %v1107
      %v1351 = vpop.f32.mrf.mxu0
      %v1352 = vadd.f32 %v1323, %v1351
      %v1353 = vpop.f32.mrf.mxu0
      %v1354 = vadd.f32 %v1325, %v1353
      %1355 = vmatmul.bf16.gmra.mxu0 %v1110
      %v1356 = vpop.f32.mrf.mxu0
      %v1357 = vadd.f32 %v1328, %v1356
      %v1358 = vpop.f32.mrf.mxu0
      %v1359 = vadd.f32 %v1330, %v1358
      %1360 = vmatmul.bf16.gmra.mxu0 %v1113
      %v1361 = vpop.f32.mrf.mxu0
      %v1362 = vadd.f32 %v1333, %v1361
      %v1363 = vpop.f32.mrf.mxu0
      %v1364 = vadd.f32 %v1335, %v1363
      %1365 = vdwg.mxu0
      %1366 = vmatpush.bf16.msra.mxu0 %v1283
      %1367 = vmatpush.bf16.msra.mxu0 %v1282
      %1368 = vmatpush.bf16.msra.mxu0 %v1281
      %1369 = vmatpush.bf16.msra.mxu0 %v1280
      %1370 = vmatpush.bf16.msra.mxu0 %v1279
      %1371 = vmatpush.bf16.msra.mxu0 %v1278
      %1372 = vmatpush.bf16.msra.mxu0 %v1277
      %1373 = vmatpush.bf16.msra.mxu0 %v1276
      %1374 = vmatmul.bf16.gmra.mxu0 %v1105
      %v1375 = vpop.f32.mrf.mxu0
      %v1376 = vadd.f32 %v1347, %v1375
      %v1377 = vpop.f32.mrf.mxu0
      %v1378 = vadd.f32 %v1349, %v1377
      %1379 = vmatmul.bf16.gmra.mxu0 %v1108
      %v1380 = vpop.f32.mrf.mxu0
      %v1381 = vadd.f32 %v1352, %v1380
      %v1382 = vpop.f32.mrf.mxu0
      %v1383 = vadd.f32 %v1354, %v1382
      %1384 = vmatmul.bf16.gmra.mxu0 %v1111
      %v1385 = vpop.f32.mrf.mxu0
      %v1386 = vadd.f32 %v1357, %v1385
      %v1387 = vpop.f32.mrf.mxu0
      %v1388 = vadd.f32 %v1359, %v1387
      %1389 = vmatmul.bf16.gmra.mxu0 %v1114
      %v1390 = vpop.f32.mrf.mxu0
      %v1391 = vadd.f32 %v1362, %v1390
      %v1392 = vpop.f32.mrf.mxu0
      %v1393 = vadd.f32 %v1364, %v1392
      %1394 = vdwg.mxu0
      %v1395 = vadd.f32 %v1059, %v1376
      %v1396 = vadd.f32 %v1061, %v1378
      %v1397 = vadd.f32 %v1064, %v1381
      %v1398 = vadd.f32 %v1066, %v1383
      %v1399 = vadd.f32 %v1069, %v1386
      %v1400 = vadd.f32 %v1071, %v1388
      %v1401 = vadd.f32 %v1074, %v1391
      %v1402 = vadd.f32 %v1076, %v1393
      %v1403 = vld [vmem:[%s5] sm:$0x3]
      %1404 = vrot.lane.b32.xlu0 %v286, 112
      %v1405 = vpop.permute.xlu0 %1404
      %1406 = vrot.lane.b32.xlu0 %v287, 112
      %v1407 = vpop.permute.xlu0 %1406
      %1408 = vrot.lane.b32.xlu0 %v288, 112
      %v1409 = vpop.permute.xlu0 %1408
      %1410 = vrot.lane.b32.xlu0 %v289, 112
      %v1411 = vpop.permute.xlu0 %1410
      %vm1412 = vcmask 31744
      %v1414 = vsel %vm1412, %v1405, 0
      %v1417 = vsel %vm1412, %v1407, 0
      %v1420 = vsel %vm1412, %v1409, 0
      %v1423 = vsel %vm1412, %v1411, 0
      %v1426 = vsel %vm318, %v1403, 0
      %1428 = vmatpush.bf16.msra.mxu0 0
      %1429 = vmatpush.bf16.msra.mxu0 0
      %1430 = vmatpush.bf16.msra.mxu0 0
      %1431 = vmatpush.bf16.msra.mxu0 0
      %1432 = vmatpush.bf16.msra.mxu0 0
      %1433 = vmatpush.bf16.msra.mxu0 0
      %1434 = vmatpush.bf16.msra.mxu0 0
      %1435 = vmatpush.bf16.msra.mxu0 %v1426
      %1436 = vmatmul.bf16.gmra.mxu0 %v1414
      %v1437 = vpop.f32.mrf.mxu0
      %v1438 = vadd.f32 0.0, %v1437
      %v1439 = vpop.f32.mrf.mxu0
      %v1440 = vadd.f32 0.0, %v1439
      %1441 = vmatmul.bf16.gmra.mxu0 %v1417
      %v1442 = vpop.f32.mrf.mxu0
      %v1443 = vadd.f32 0.0, %v1442
      %v1444 = vpop.f32.mrf.mxu0
      %v1445 = vadd.f32 0.0, %v1444
      %1446 = vmatmul.bf16.gmra.mxu0 %v1420
      %v1447 = vpop.f32.mrf.mxu0
      %v1448 = vadd.f32 0.0, %v1447
      %v1449 = vpop.f32.mrf.mxu0
      %v1450 = vadd.f32 0.0, %v1449
      %1451 = vmatmul.bf16.gmra.mxu0 %v1423
      %v1452 = vpop.f32.mrf.mxu0
      %v1453 = vadd.f32 0.0, %v1452
      %v1454 = vpop.f32.mrf.mxu0
      %v1455 = vadd.f32 0.0, %v1454
      %1456 = vdwg.mxu0
      %v1457 = vld [vmem:[%s4] sm:$0x1]
      %v1459 = vperm.slane %v1457, 0
      %v1461 = vadd.f32 %v1395, %v1459
      %v1462 = vadd.f32 %v1396, %v1459
      %v1463 = vadd.f32 %v1397, %v1459
      %v1464 = vadd.f32 %v1398, %v1459
      %v1465 = vadd.f32 %v1399, %v1459
      %v1466 = vadd.f32 %v1400, %v1459
      %v1467 = vadd.f32 %v1401, %v1459
      %v1468 = vadd.f32 %v1402, %v1459
      %v1469 = vadd.f32 %v1461, %v1438
      %v1470 = vadd.f32 %v1462, %v1440
      %v1471 = vadd.f32 %v1463, %v1443
      %v1472 = vadd.f32 %v1464, %v1445
      %v1473 = vadd.f32 %v1465, %v1448
      %v1474 = vadd.f32 %v1466, %v1450
      %v1475 = vadd.f32 %v1467, %v1453
      %v1476 = vadd.f32 %v1468, %v1455
      %v1477 = vmax.f32 %v1469, 0.0
      %v1478 = vmax.f32 %v1470, 0.0
      %v1479 = vmax.f32 %v1471, 0.0
      %v1480 = vmax.f32 %v1472, 0.0
      %v1481 = vmax.f32 %v1473, 0.0
      %v1482 = vmax.f32 %v1474, 0.0
      %v1483 = vmax.f32 %v1475, 0.0
      %v1484 = vmax.f32 %v1476, 0.0
      %1485 = vst [vmem:[%s251] sm:$0xff] %v1477
      %1486 = vst [vmem:[%s251 + $0x8] sm:$0xff] %v1478
      %1487 = vst [vmem:[%s251 + $0x10] sm:$0xff] %v1479
      %1488 = vst [vmem:[%s251 + $0x18] sm:$0xff] %v1480
      %1489 = vst [vmem:[%s251 + $0x20] sm:$0xff] %v1481
      %1490 = vst [vmem:[%s251 + $0x28] sm:$0xff] %v1482
      %1491 = vst [vmem:[%s251 + $0x30] sm:$0xff] %v1483
      %1492 = vst [vmem:[%s251 + $0x38] sm:$0xff] %v1484
      %p1493 = scmp.lt.s32.totalorder %s17, 1
      %s1494 = scalar_select %p1493, %s17, 1
      %s1495 = smul.addr %s1494, 8
      %s1496 = smul.addr %s1495, 8
      %s1497 = scalar_lea.vmem %s6, %s1496
      // Predicated region
      $region45: #{residual_block_forward.1} parent=43 // pred_check
        %p1498 = pneg %p166
      $region46: #{residual_block_forward.1} parent=43 // pred_check_branch
        %1500 = sbr.rel (%p1498) target = $region48
      $region47: #{residual_block_forward.1} parent=43 // pred_region
        _
      $region48: #{residual_block_forward.1} parent=43 // pred_fallthru
        _
    $region44: #{residual_block_forward.1} parent=5 // pred_fallthru
      _
    %p1501 = scmp.le.s32.totalorder 2, %s12
    // Predicated region
    $region49: #{residual_block_forward.1} parent=5 // pred_check
      %p1502 = pneg %p1501
    $region50: #{residual_block_forward.1} parent=5 // pred_check_branch
      %1504 = sbr.rel (%p1502) target = $region52
    $region51: #{residual_block_forward.1} parent=5 // pred_region
      %s1505 = ssub.s32 %s12, 2
      // Predicated region
      $region53: #{residual_block_forward.1} parent=51 // pred_check
        %p1506 = pneg %p172
      $region54: #{residual_block_forward.1} parent=51 // pred_check_branch
        %1508 = sbr.rel (%p1506) target = $region56
      $region55: #{residual_block_forward.1} parent=51 // pred_region
        %p1509 = scmp.lt.s32.totalorder %s18, 1
        %s1510 = scalar_select %p1509, %s18, 1
        %s1511 = smul.addr %s1510, 8
        %s1512 = smul.addr %s1511, 8
        %s1513 = scalar_lea.vmem %s6, %s1512
      $region56: #{residual_block_forward.1} parent=51 // pred_fallthru
        _
    $region52: #{residual_block_forward.1} parent=5 // pred_fallthru
      _
  $region6: #{residual_block_forward.1} parent=0 // loop_footer
    %s16 = sadd.s32 1, %s12
  $region7: #{residual_block_forward.1} parent=0 // loop_footer_branch
    %11 = sbr.rel target = $region3
  $region8: #{residual_block_forward.1} parent=0 // loop_exit
    _

</llo_original>
